<compile_context>
chip_gen: v6e
topology: v6e:2x2x1
jax: 0.10.0
libtpu: 0.0.40
codegen_flags: <defaults>
</compile_context>

<pallas_src>
import math
import numpy as np
import jax
import jax.numpy as jnp
from jax.experimental import pallas as pl
from jax.experimental.pallas import tpu as pltpu


# ============================================================================
# Hardware-aware sizing helpers  [R2, R8]
# ============================================================================
def _tpu_vmem_capacity():
    try:
        return int(pltpu.get_tpu_info().vmem_capacity_bytes)
    except Exception:
        return 64 * 1024 * 1024          # v7x physical VMEM -- the safest floor


def _lane_unit():
    """MXU-friendly tile quantum: 256 on v6e/v7x, 128 on v4/v5."""
    try:
        kind = jax.devices()[0].device_kind.lower()
    except Exception:
        kind = ""
    return 256 if ("v6" in kind or "v7" in kind) else 128


def _vmem_budget(override=None):
    budget = (_tpu_vmem_capacity() * 3) // 4   # ~48 MiB v7x, ~96 MiB v5e/v6e
    if override is not None:
        budget = min(budget, int(override))
    return budget


def _divisor_tiles(dim, lane_unit):
    """Tile candidates for one GEMM dim, largest first: full dim, then
    power-of-two multiples of the MXU quantum that divide it exactly (so every
    grid extent divides exactly -- review correctness concern #2)."""
    opts = []
    t = lane_unit
    while t < dim:
        if dim % t == 0:
            opts.append(t)
        t *= 2
    if 128 < dim and dim % 128 == 0 and 128 not in opts:
        opts.append(128)
    return [dim] + sorted(set(opts), reverse=True)


def _row_tile(rows, cap=1024):
    """Row tile: full extent when small, else an exact multiple-of-8 divisor."""
    if rows <= cap:
        return rows
    for t in range(cap - cap % 8, 7, -8):
        if rows % t == 0:
            return t
    return rows


def _spectral_tiles(b_rows, kdim, pdim, itemsize, budget):
    """(bm, bk, bn) for the streamed spectral GEMMs: largest footprint whose
    double-buffered weight/activation working set stays inside a fraction of
    the per-generation VMEM budget, preferring wide (lane-dense) output tiles.
    [R1, R8, R9]"""
    lane = _lane_unit()
    bm = _row_tile(b_rows, cap=256)
    limit = max(int(0.35 * budget), 1 << 20)
    best = None
    for bn in _divisor_tiles(pdim, lane):
        for bk in _divisor_tiles(kdim, lane):
            weights = 3 * bk * bn * itemsize * 2           # 3 operators, 2 bufs
            acts = 2 * bm * bk * 4 * 2 + 2 * bm * bn * 4 * 2
            scratch = 2 * bm * bn * 4
            if weights + acts + scratch <= limit:
                cand = (bk * bn, bn, bk)
                if best is None or cand > best:
                    best = cand
    if best is None:                                       # smallest legal tiles
        bn = _divisor_tiles(pdim, lane)[-1]
        bk = _divisor_tiles(kdim, lane)[-1]
    else:
        _, bn, bk = best
    return bm, bk, bn


# ============================================================================
# Pallas kernels
# ============================================================================
def _make_fused_pyramid_kernel(n_levels, param_dtype):
    """Whole-pyramid kernel [R7]: every operator VMEM resident, one launch.
    Ref order: x, [Wud, Wus, Wx]*L, bias, [Wxs, Wud_rec]*L, out."""
    def kernel(*refs):
        x_ref = refs[0]
        pos = 1
        dec = []
        for _ in range(n_levels):
            dec.append(refs[pos:pos + 3])
            pos += 3
        bias_ref = refs[pos]
        pos += 1
        rec = []
        for _ in range(n_levels):
            rec.append(refs[pos:pos + 2])
            pos += 2
        out_ref = refs[pos]

        x = x_ref[...].astype(jnp.float32)
        uds, uss = [], []
        for lev, (wud, wus, wx) in enumerate(dec):
            xb = x.astype(param_dtype)                      # [R3]
            uds.append(jnp.dot(xb, wud[...], preferred_element_type=jnp.float32))
            uss.append(jnp.dot(xb, wus[...], preferred_element_type=jnp.float32))
            x = jnp.dot(xb, wx[...], preferred_element_type=jnp.float32)
            if lev == n_levels - 1:
                x = x + bias_ref[...]                       # folded T0 bias
        for lev in range(n_levels - 1, -1, -1):
            wxs, wudr = rec[lev]
            xs = (x + uss[lev]).astype(param_dtype)
            ud = uds[lev].astype(param_dtype)
            x = (jnp.dot(xs, wxs[...], preferred_element_type=jnp.float32)
                 + jnp.dot(ud, wudr[...], preferred_element_type=jnp.float32))
        out_ref[...] = x
    return kernel


def fused_pyramid_call(x2, dec_ws, bias, rec_ws, param_dtype, vmem_limit):
    b, width = x2.shape
    args = [x2]
    for triple in dec_ws:
        args += list(triple)
    args.append(bias)
    for pair in rec_ws:
        args += list(pair)
    flops, wbytes = 0, 0
    for a in args[1:]:
        wbytes += a.size * a.dtype.itemsize
        if a.ndim == 2 and a.shape[0] > 1:
            flops += 2 * b * a.shape[0] * a.shape[1]
    return pl.pallas_call(
        _make_fused_pyramid_kernel(len(dec_ws), param_dtype),
        out_shape=jax.ShapeDtypeStruct((b, width), jnp.float32),
        compiler_params=pltpu.CompilerParams(vmem_limit_bytes=vmem_limit),
        cost_estimate=pl.CostEstimate(
            flops=flops, transcendentals=0,
            bytes_accessed=wbytes + 2 * b * width * 4),
    )(*args)


def _make_analysis_kernel(with_t0, param_dtype):
    """Factored wavelet analysis [R5]: (B*Nh*c, 2k) @ (2k, k) matmuls; at the
    last level the T0 Linear (weight + bias) is folded into a third matmul."""
    if with_t0:
        def kernel(xa_ref, wd_ref, ws_ref, wt_ref, b_ref, d_ref, s_ref, t_ref):
            xa = xa_ref[...].astype(param_dtype)
            d_ref[...] = jnp.dot(xa, wd_ref[...], preferred_element_type=jnp.float32)
            s_ref[...] = jnp.dot(xa, ws_ref[...], preferred_element_type=jnp.float32)
            t_ref[...] = (jnp.dot(xa, wt_ref[...], preferred_element_type=jnp.float32)
                          + b_ref[...])
        return kernel

    def kernel(xa_ref, wd_ref, ws_ref, d_ref, s_ref):
        xa = xa_ref[...].astype(param_dtype)
        d_ref[...] = jnp.dot(xa, wd_ref[...], preferred_element_type=jnp.float32)
        s_ref[...] = jnp.dot(xa, ws_ref[...], preferred_element_type=jnp.float32)
    return kernel


def analysis_call(xa, wd, ws, wt=None, bias=None, *, param_dtype, vmem_limit):
    rows, two_k = xa.shape
    kk = wd.shape[1]
    bm = _row_tile(rows)
    assert rows % bm == 0
    row_spec = pl.BlockSpec((bm, two_k), lambda i: (i, 0))
    w_spec = pl.BlockSpec((two_k, kk), lambda i: (0, 0))
    out_spec = pl.BlockSpec((bm, kk), lambda i: (i, 0))
    with_t0 = wt is not None
    in_specs = [row_spec, w_spec, w_spec]
    args = [xa, wd, ws]
    out_shapes = [jax.ShapeDtypeStruct((rows, kk), jnp.float32)] * 2
    out_specs = [out_spec, out_spec]
    if with_t0:
        in_specs += [w_spec, pl.BlockSpec((1, kk), lambda i: (0, 0))]
        args += [wt, bias]
        out_shapes.append(jax.ShapeDtypeStruct((rows, kk), jnp.float32))
        out_specs.append(out_spec)
    return pl.pallas_call(
        _make_analysis_kernel(with_t0, param_dtype),
        out_shape=tuple(out_shapes),
        grid=(rows // bm,),
        in_specs=in_specs,
        out_specs=tuple(out_specs),
        compiler_params=pltpu.CompilerParams(
            dimension_semantics=("parallel",), vmem_limit_bytes=vmem_limit),
    )(*args)


def _make_spectral_kernel(nk_steps, param_dtype):
    """Streamed spectral mode-mix [R1]: Ud = d@S_A + s@S_B, Us = d@S_C with
    column/K tiling and f32 accumulator scratch (P3 init/finalize)."""
    def kernel(d_ref, s_ref, sa_ref, sb_ref, sc_ref, ud_ref, us_ref,
               acc_ud, acc_us):
        kk = pl.program_id(2)

        @pl.when(kk == 0)
        def _():
            acc_ud[...] = jnp.zeros_like(acc_ud)
            acc_us[...] = jnp.zeros_like(acc_us)

        d = d_ref[...].astype(param_dtype)
        s = s_ref[...].astype(param_dtype)
        acc_ud[...] += (jnp.dot(d, sa_ref[...], preferred_element_type=jnp.float32)
                        + jnp.dot(s, sb_ref[...], preferred_element_type=jnp.float32))
        acc_us[...] += jnp.dot(d, sc_ref[...], preferred_element_type=jnp.float32)

        @pl.when(kk == nk_steps - 1)
        def _():
            ud_ref[...] = acc_ud[...]
            us_ref[...] = acc_us[...]
    return kernel


def spectral_call(d, s, sa, sb, sc, *, param_dtype, budget, vmem_limit):
    b, kdim = d.shape
    pdim = sa.shape[1]
    bm, bk, bn = _spectral_tiles(b, kdim, pdim, sa.dtype.itemsize, budget)
    assert b % bm == 0 and kdim % bk == 0 and pdim % bn == 0
    grid = (b // bm, pdim // bn, kdim // bk)        # reduction innermost [R10]
    rows_spec = pl.BlockSpec((bm, bk), lambda i, j, kk: (i, kk))
    w_spec = pl.BlockSpec((bk, bn), lambda i, j, kk: (kk, j))
    out_spec = pl.BlockSpec((bm, bn), lambda i, j, kk: (i, j))
    return pl.pallas_call(
        _make_spectral_kernel(grid[2], param_dtype),
        out_shape=(jax.ShapeDtypeStruct((b, pdim), jnp.float32),
                   jax.ShapeDtypeStruct((b, pdim), jnp.float32)),
        grid=grid,
        in_specs=[rows_spec, rows_spec, w_spec, w_spec, w_spec],
        out_specs=(out_spec, out_spec),
        scratch_shapes=[pltpu.VMEM((bm, bn), jnp.float32),
                        pltpu.VMEM((bm, bn), jnp.float32)],
        compiler_params=pltpu.CompilerParams(
            dimension_semantics=("parallel", "parallel", "arbitrary"),
            vmem_limit_bytes=vmem_limit),
        cost_estimate=pl.CostEstimate(
            flops=2 * b * kdim * pdim * 3, transcendentals=0,
            bytes_accessed=(3 * kdim * pdim * sa.dtype.itemsize
                            + 2 * b * kdim * 4 + 2 * b * pdim * 4)),
    )(d, s, sa, sb, sc)


def _make_recon_kernel(param_dtype):
    """Factored reconstruction level [R6]: out_eo = (x+Us)@[rc_e|rc_o][:k]
    + Ud@[rc_e|rc_o][k:]; the even/odd interleave lives in the output layout."""
    def kernel(x_ref, us_ref, ud_ref, w1_ref, w2_ref, o_ref):
        xs = (x_ref[...] + us_ref[...]).astype(param_dtype)
        ud = ud_ref[...].astype(param_dtype)
        o_ref[...] = (jnp.dot(xs, w1_ref[...], preferred_element_type=jnp.float32)
                      + jnp.dot(ud, w2_ref[...], preferred_element_type=jnp.float32))
    return kernel


def recon_call(x_rows, us_rows, ud_rows, w1, w2, *, param_dtype, vmem_limit):
    rows, kk = x_rows.shape
    two_k = w1.shape[1]
    bm = _row_tile(rows)
    assert rows % bm == 0
    row_spec = pl.BlockSpec((bm, kk), lambda i: (i, 0))
    w_spec = pl.BlockSpec((kk, two_k), lambda i: (0, 0))
    return pl.pallas_call(
        _make_recon_kernel(param_dtype),
        out_shape=jax.ShapeDtypeStruct((rows, two_k), jnp.float32),
        grid=(rows // bm,),
        in_specs=[row_spec, row_spec, row_spec, w_spec, w_spec],
        out_specs=pl.BlockSpec((bm, two_k), lambda i: (i, 0)),
        compiler_params=pltpu.CompilerParams(
            dimension_semantics=("parallel",), vmem_limit_bytes=vmem_limit),
    )(x_rows, us_rows, ud_rows, w1, w2)


def _make_t0_kernel(param_dtype):
    def kernel(x_ref, w_ref, b_ref, o_ref):
        xw = x_ref[...].astype(param_dtype)
        o_ref[...] = (jnp.dot(xw, w_ref[...], preferred_element_type=jnp.float32)
                      + b_ref[...])
    return kernel


def t0_call(x_rows, w, bias, *, param_dtype, vmem_limit):
    rows, kk = x_rows.shape
    bm = _row_tile(rows)
    assert rows % bm == 0
    return pl.pallas_call(
        _make_t0_kernel(param_dtype),
        out_shape=jax.ShapeDtypeStruct((rows, kk), jnp.float32),
        grid=(rows // bm,),
        in_specs=[pl.BlockSpec((bm, kk), lambda i: (i, 0)),
                  pl.BlockSpec((kk, kk), lambda i: (0, 0)),
                  pl.BlockSpec((1, kk), lambda i: (0, 0))],
        out_specs=pl.BlockSpec((bm, kk), lambda i: (i, 0)),
        compiler_params=pltpu.CompilerParams(
            dimension_semantics=("parallel",), vmem_limit_bytes=vmem_limit),
    )(x_rows, w, bias)


# ============================================================================
# Host-side (float64) operator construction.
# ============================================================================
def _spectral_operator(wr, wi, n, modes1):
    """Dense (n*ck, n*ck) operator equal to irfft(pad(mix(rfft(x)[:l]))) in the
    natural (position, channel) flattening (index = pos*ck + chan)."""
    wr = np.asarray(wr, np.float64)
    wi = np.asarray(wi, np.float64)
    ck = wr.shape[0]
    l = min(modes1, n // 2 + 1)
    f = np.arange(l, dtype=np.float64)
    wgt = np.where((f == 0) | ((n % 2 == 0) & (f == n // 2)), 1.0, 2.0)
    pos = np.arange(n, dtype=np.float64)
    diff = pos[:, None] - pos[None, :]
    ang = 2.0 * np.pi * f[:, None, None] * diff[None, :, :] / n
    k4 = (np.einsum('iof,fnm->inom', wr[:, :, :l] * wgt, np.cos(ang))
          + np.einsum('iof,fnm->inom', wi[:, :, :l] * wgt, np.sin(ang)))
    return k4.transpose(1, 0, 3, 2).reshape(n * ck, n * ck) / n


def _wavelet_perm(n_cur, c, k):
    """Permutation x(n,c,k) -> xa(n/2,c,2k) == cat([x[::2], x[1::2]], -1)."""
    nh = n_cur // 2
    perm = np.zeros((n_cur * c * k, nh * c * 2 * k))
    for m in range(nh):
        for ci in range(c):
            for q in range(2 * k):
                src = ((2 * m + q // k) * c + ci) * k + (q % k)
                dst = (m * c + ci) * 2 * k + q
                perm[src, dst] = 1.0
    return perm


def _recon_mats(rc_e, rc_o, nh, c, k):
    """evenOdd split into (nh*ck, 2*nh*ck) operators for (x+Us) and Ud (dense,
    used only on the VMEM-resident fused path)."""
    rc_e = np.asarray(rc_e, np.float64)
    rc_o = np.asarray(rc_o, np.float64)
    ck = c * k
    m_xs = np.zeros((nh * ck, 2 * nh * ck))
    m_ud = np.zeros((nh * ck, 2 * nh * ck))
    for m in range(nh):
        for ci in range(c):
            row0 = (m * c + ci) * k
            for p_idx, rc in enumerate((rc_e, rc_o)):
                col0 = ((2 * m + p_idx) * c + ci) * k
                m_xs[row0:row0 + k, col0:col0 + k] = rc[:k, :]
                m_ud[row0:row0 + k, col0:col0 + k] = rc[k:, :]
    return m_xs, m_ud


def build_factored_ops(params, n_in):
    """Factored per-level operators (streamed path, [R5]/[R6]): only the
    genuinely dense spectral operators are materialised; wavelet / recon /
    T0 factors stay (2k, k)-sized."""
    k = int(params["k"]); c = int(params["c"]); ck = c * k
    modes1 = int(params["modes1"]); big_l = int(params["L"])
    ns = int(math.floor(np.log2(n_in)))
    nl = 2 ** int(math.ceil(np.log2(n_in)))
    n_levels = max(ns - big_l, 0)

    ec_d = np.asarray(params["ec_d"], np.float64)
    ec_s = np.asarray(params["ec_s"], np.float64)
    rc_e = np.asarray(params["rc_e"], np.float64)
    rc_o = np.asarray(params["rc_o"], np.float64)
    t0_w = np.asarray(params["T0_w"], np.float64)
    t0_b = np.asarray(params["T0_b"], np.float64)

    levels = []
    n_cur = nl
    for _ in range(n_levels):
        nh = n_cur // 2
        levels.append(dict(
            nh=nh,
            s_a=_spectral_operator(params["A_wr"], params["A_wi"], nh, modes1),
            s_b=_spectral_operator(params["B_wr"], params["B_wi"], nh, modes1),
            s_c=_spectral_operator(params["C_wr"], params["C_wi"], nh, modes1)))
        n_cur = nh

    return dict(
        nl=nl, c=c, k=k, n_levels=n_levels, levels=levels,
        w_d=ec_d, w_s=ec_s,
        w_t0=ec_s @ t0_w.T, b_t0=t0_b,            # T0 folded into the last level
        t0_w=t0_w.T, t0_b_only=t0_b,              # plain T0 for the L >= ns case
        w_rec1=np.concatenate([rc_e[:k, :], rc_o[:k, :]], axis=1),   # (k, 2k)
        w_rec2=np.concatenate([rc_e[k:, :], rc_o[k:, :]], axis=1))   # (k, 2k)


def build_folded_ops(params, n_in):
    """Dense folded per-level operators for the single-launch VMEM-resident
    path [R7]: one level == three MXU matmuls, no relayouts."""
    fo = build_factored_ops(params, n_in)
    k, c = fo["k"], fo["c"]
    nl, n_levels = fo["nl"], fo["n_levels"]
    ec_d, ec_s = fo["w_d"], fo["w_s"]
    rc_e = np.asarray(params["rc_e"], np.float64)
    rc_o = np.asarray(params["rc_o"], np.float64)
    t0_w = np.asarray(params["T0_w"], np.float64)
    t0_b = np.asarray(params["T0_b"], np.float64)

    dec, rec = [], []
    bias = None
    n_cur = nl
    for lev in range(n_levels):
        nh = n_cur // 2
        perm = _wavelet_perm(n_cur, c, k)
        m_d = perm @ np.kron(np.eye(nh * c), ec_d)
        m_s = perm @ np.kron(np.eye(nh * c), ec_s)
        lv = fo["levels"][lev]
        w_ud = m_d @ lv["s_a"] + m_s @ lv["s_b"]
        w_us = m_d @ lv["s_c"]
        w_x = m_s
        if lev == n_levels - 1:
            w_x = m_s @ np.kron(np.eye(nh * c), t0_w.T)
            bias = np.tile(t0_b, nh * c)
        dec.append((w_ud, w_us, w_x))
        rec.append(_recon_mats(rc_e, rc_o, nh, c, k))
        n_cur = nh
    return dict(nl=nl, c=c, k=k, n_levels=n_levels, dec=dec, rec=rec, bias=bias)


def _folded_weight_elems(nl, ck, n_levels):
    total, n_cur = 0, nl * ck
    for _ in range(n_levels):
        nh = n_cur // 2
        total += 3 * n_cur * nh + 2 * nh * n_cur
        n_cur = nh
    return total


# ============================================================================
# Forward builder
# ============================================================================
def make_forward(params, n_in, *, path="auto", param_dtype=jnp.bfloat16,
                 vmem_budget_override=None):
    fo = build_factored_ops(params, n_in)
    nl, c, k, n_levels = fo["nl"], fo["c"], fo["k"], fo["n_levels"]
    ck = c * k
    budget = _vmem_budget(vmem_budget_override)
    vmem_limit = budget

    if n_levels == 0:
        path = "t0_only"
    elif path == "auto":
        fused_bytes = (_folded_weight_elems(nl, ck, n_levels)
                       * jnp.dtype(param_dtype).itemsize)
        path = "fused" if fused_bytes <= budget // 2 else "tiled"

    if path == "fused":
        fol = build_folded_ops(params, n_in)
        dec_ws = [tuple(jnp.asarray(w, param_dtype) for w in t) for t in fol["dec"]]
        rec_ws = [tuple(jnp.asarray(w, param_dtype) for w in t) for t in fol["rec"]]
        bias = jnp.asarray(fol["bias"], jnp.float32).reshape(1, -1)

        def fwd(x):
            b = x.shape[0]
            if nl > n_in:
                x = jnp.concatenate([x, x[:, :nl - n_in]], axis=1)
            x2 = x.reshape(b, nl * ck).astype(jnp.float32)
            out = fused_pyramid_call(x2, dec_ws, bias, rec_ws, param_dtype,
                                     vmem_limit)
            return out.reshape(b, nl, c, k)[:, :n_in]
        return jax.jit(fwd)

    if path == "tiled":
        w_d = jnp.asarray(fo["w_d"], param_dtype)
        w_s = jnp.asarray(fo["w_s"], param_dtype)
        w_t0 = jnp.asarray(fo["w_t0"], param_dtype)
        b_t0 = jnp.asarray(fo["b_t0"], jnp.float32).reshape(1, -1)
        w_r1 = jnp.asarray(fo["w_rec1"], param_dtype)
        w_r2 = jnp.asarray(fo["w_rec2"], param_dtype)
        spec = [(jnp.asarray(lv["s_a"], param_dtype),
                 jnp.asarray(lv["s_b"], param_dtype),
                 jnp.asarray(lv["s_c"], param_dtype), lv["nh"])
                for lv in fo["levels"]]

        def fwd(x):
            b = x.shape[0]
            if nl > n_in:
                x = jnp.concatenate([x, x[:, :nl - n_in]], axis=1)
            x = x.astype(jnp.float32)
            uds, uss, nhs = [], [], []
            for lev, (sa, sb, sc, nh) in enumerate(spec):
                # even/odd de-interleave is wrapper-side layout plumbing [R5]
                xa = (x.reshape(b, nh, 2, c, k).transpose(0, 1, 3, 2, 4)
                       .reshape(b * nh * c, 2 * k))
                last = lev == n_levels - 1
                if last:
                    d_r, s_r, t_r = analysis_call(
                        xa, w_d, w_s, w_t0, b_t0,
                        param_dtype=param_dtype, vmem_limit=vmem_limit)
                else:
                    d_r, s_r = analysis_call(
                        xa, w_d, w_s,
                        param_dtype=param_dtype, vmem_limit=vmem_limit)
                    t_r = None
                ud_f, us_f = spectral_call(
                    d_r.reshape(b, nh * ck), s_r.reshape(b, nh * ck),
                    sa, sb, sc, param_dtype=param_dtype, budget=budget,
                    vmem_limit=vmem_limit)
                uds.append(ud_f); uss.append(us_f); nhs.append(nh)
                x = (t_r if last else s_r).reshape(b, nh, c, k)
            for lev in range(n_levels - 1, -1, -1):
                nh = nhs[lev]
                eo = recon_call(
                    x.reshape(b * nh * c, k),
                    uss[lev].reshape(b * nh * c, k),
                    uds[lev].reshape(b * nh * c, k),
                    w_r1, w_r2, param_dtype=param_dtype, vmem_limit=vmem_limit)
                # even/odd interleave expressed in the output layout [R6]
                x = (eo.reshape(b, nh, c, 2, k).transpose(0, 1, 3, 2, 4)
                       .reshape(b, 2 * nh, c, k))
            return x[:, :n_in]
        return jax.jit(fwd)

    # path == "t0_only" (L >= floor(log2(N)): no pyramid levels, just T0)
    w_t = jnp.asarray(fo["t0_w"], param_dtype)
    b_t = jnp.asarray(fo["t0_b_only"], jnp.float32).reshape(1, -1)

    def fwd(x):
        b = x.shape[0]
        if nl > n_in:
            x = jnp.concatenate([x, x[:, :nl - n_in]], axis=1)
        rows = x.reshape(b * nl * c, k).astype(jnp.float32)
        out = t0_call(rows, w_t, b_t, param_dtype=param_dtype,
                      vmem_limit=vmem_limit)
        return out.reshape(b, nl, c, k)[:, :n_in]
    return jax.jit(fwd)


# ============================================================================
# Deterministic parameter initialization (shapes from MWT_CZ1d.__init__).
# ============================================================================
def init_params(key, k, c, alpha, big_l):
    ck = c * k
    scale = 1.0 / (ck * ck)
    ks = jax.random.split(key, 12)

    def cplx_w(k1, k2):
        return (scale * jax.random.uniform(k1, (ck, ck, alpha), jnp.float32),
                scale * jax.random.uniform(k2, (ck, ck, alpha), jnp.float32))

    a_wr, a_wi = cplx_w(ks[0], ks[1])
    b_wr, b_wi = cplx_w(ks[2], ks[3])
    c_wr, c_wi = cplx_w(ks[4], ks[5])
    bound = 1.0 / math.sqrt(k)
    t0_w = jax.random.uniform(ks[6], (k, k), jnp.float32, -bound, bound)
    t0_b = jax.random.uniform(ks[7], (k,), jnp.float32, -bound, bound)
    # TODO(synk): get_filter('legendre', k) basis construction is not reproduced;
    # ec_s/ec_d/rc_e/rc_o buffers are synthesized deterministically with the same
    # (2k, k) shapes the module registers.
    fs = 1.0 / math.sqrt(2 * k)
    ec_s = fs * jax.random.normal(ks[8], (2 * k, k), jnp.float32)
    ec_d = fs * jax.random.normal(ks[9], (2 * k, k), jnp.float32)
    rc_e = fs * jax.random.normal(ks[10], (2 * k, k), jnp.float32)
    rc_o = fs * jax.random.normal(ks[11], (2 * k, k), jnp.float32)
    return dict(A_wr=a_wr, A_wi=a_wi, B_wr=b_wr, B_wi=b_wi, C_wr=c_wr, C_wi=c_wi,
                T0_w=t0_w, T0_b=t0_b, ec_s=ec_s, ec_d=ec_d, rc_e=rc_e, rc_o=rc_o,
                modes1=alpha, L=big_l, k=k, c=c)


# ============================================================================
# float64 references (mirror the PyTorch forward exactly).
# ============================================================================
def reference_forward_np(x, p):
    x = np.asarray(x, np.float64)
    ec_d = np.asarray(p["ec_d"], np.float64)
    ec_s = np.asarray(p["ec_s"], np.float64)
    rc_e = np.asarray(p["rc_e"], np.float64)
    rc_o = np.asarray(p["rc_o"], np.float64)
    k = int(p["k"])

    def sp_ft(xv, wr, wi):
        b, n, c, kk = xv.shape
        ck = c * kk
        xm = xv.reshape(b, n, ck).transpose(0, 2, 1)
        xf = np.fft.rfft(xm, axis=-1)
        l = min(int(p["modes1"]), n // 2 + 1)
        w = (np.asarray(wr, np.float64) + 1j * np.asarray(wi, np.float64))[:, :, :l]
        out_ft = np.zeros((b, ck, n // 2 + 1), np.complex128)
        out_ft[:, :, :l] = np.einsum("bix,iox->box", xf[:, :, :l], w)
        y = np.fft.irfft(out_ft, n=n, axis=-1)
        return y.transpose(0, 2, 1).reshape(b, n, c, kk)

    b, n, c, _ = x.shape
    ns = int(math.floor(np.log2(n)))
    nl = 2 ** int(math.ceil(np.log2(n)))
    x = np.concatenate([x, x[:, :nl - n]], axis=1)
    ud, us = [], []
    for _ in range(ns - int(p["L"])):
        xa = np.concatenate([x[:, ::2], x[:, 1::2]], axis=-1)
        d = xa @ ec_d
        x = xa @ ec_s
        ud.append(sp_ft(d, p["A_wr"], p["A_wi"]) + sp_ft(x, p["B_wr"], p["B_wi"]))
        us.append(sp_ft(d, p["C_wr"], p["C_wi"]))
    x = x @ np.asarray(p["T0_w"], np.float64).T + np.asarray(p["T0_b"], np.float64)
    for i in range(ns - 1 - int(p["L"]), -1, -1):
        x = x + us[i]
        x = np.concatenate([x, ud[i]], axis=-1)
        x_e = x @ rc_e
        x_o = x @ rc_o
        bx, nx, cx, _ = x.shape
        x = np.stack([x_e, x_o], axis=2).reshape(bx, 2 * nx, cx, k)
    return x[:, :n]


def factored_forward_np(x, fo, n_in):
    """float64 forward with the SAME factored operators/layout plumbing as the
    streamed device path (validates the factorization exactly)."""
    nl, c, k, n_levels = fo["nl"], fo["c"], fo["k"], fo["n_levels"]
    ck = c * k
    x = np.asarray(x, np.float64)
    b = x.shape[0]
    if nl > n_in:
        x = np.concatenate([x, x[:, :nl - n_in]], axis=1)
    uds, uss, nhs = [], [], []
    for lev, lv in enumerate(fo["levels"]):
        nh = lv["nh"]
        xa = (x.reshape(b, nh, 2, c, k).transpose(0, 1, 3, 2, 4)
               .reshape(b * nh * c, 2 * k))
        d_r = xa @ fo["w_d"]
        s_r = xa @ fo["w_s"]
        d_f = d_r.reshape(b, nh * ck)
        s_f = s_r.reshape(b, nh * ck)
        uds.append(d_f @ lv["s_a"] + s_f @ lv["s_b"])
        uss.append(d_f @ lv["s_c"])
        nhs.append(nh)
        if lev == n_levels - 1:
            x = (xa @ fo["w_t0"] + fo["b_t0"]).reshape(b, nh, c, k)
        else:
            x = s_r.reshape(b, nh, c, k)
    if n_levels == 0:
        x = (x.reshape(b * nl * c, k) @ fo["t0_w"]
             + fo["t0_b_only"]).reshape(b, nl, c, k)
    for lev in range(n_levels - 1, -1, -1):
        nh = nhs[lev]
        eo = ((x.reshape(b * nh * c, k) + uss[lev].reshape(b * nh * c, k))
              @ fo["w_rec1"]
              + uds[lev].reshape(b * nh * c, k) @ fo["w_rec2"])
        x = (eo.reshape(b, nh, c, 2, k).transpose(0, 1, 3, 2, 4)
               .reshape(b, 2 * nh, c, k))
    return x[:, :n_in]


def folded_forward_np(x, fol, n_in):
    """float64 forward with the folded dense operators of the fused path."""
    nl, c, k, n_levels = fol["nl"], fol["c"], fol["k"], fol["n_levels"]
    ck = c * k
    x = np.asarray(x, np.float64)
    b = x.shape[0]
    if nl > n_in:
        x = np.concatenate([x, x[:, :nl - n_in]], axis=1)
    cur = x.reshape(b, nl * ck)
    uds, uss = [], []
    for lev, (w_ud, w_us, w_x) in enumerate(fol["dec"]):
        uds.append(cur @ w_ud)
        uss.append(cur @ w_us)
        cur = cur @ w_x
        if lev == n_levels - 1:
            cur = cur + fol["bias"]
    for lev in range(n_levels - 1, -1, -1):
        w_xs, w_udr = fol["rec"][lev]
        cur = (cur + uss[lev]) @ w_xs + uds[lev] @ w_udr
    return cur.reshape(b, nl, c, k)[:, :n_in]


# ============================================================================
if __name__ == "__main__":
    key = jax.random.PRNGKey(0)
    # (cfg, path, param_dtype, device_tol, vmem_budget_override)
    configs = [
        # small problem, f32 operators, single-launch fused pyramid [R7]
        (dict(B=2, N=16, c=1, k=4, alpha=16, L=0), "fused", jnp.float32, 2e-2, None),
        # auto path resolves to fused; bf16 operators [R3]
        (dict(B=3, N=32, c=2, k=3, alpha=8, L=0), "auto", jnp.bfloat16, 6e-2, None),
        # same shape on the streamed/factored path (cross-checks both paths)
        (dict(B=3, N=32, c=2, k=3, alpha=8, L=0), "tiled", jnp.bfloat16, 6e-2, None),
        # larger problem on the streamed path with an artificially small VMEM
        # budget so both column- and K-tiling of the spectral GEMMs kick in
        # (addresses the "large-N regime never compiled/checked" concern).
        (dict(B=2, N=64, c=8, k=4, alpha=16, L=0), "tiled", jnp.bfloat16, 6e-2,
         3 * 1024 * 1024),
    ]
    for cfg, path, pdt, tol, override in configs:
        key, kx, kp = jax.random.split(key, 3)
        params = init_params(kp, cfg["k"], cfg["c"], cfg["alpha"], cfg["L"])
        x = jax.random.normal(kx, (cfg["B"], cfg["N"], cfg["c"], cfg["k"]),
                              jnp.float32)
        xn = np.asarray(x)
        ref = reference_forward_np(xn, params)
        denom = np.max(np.abs(ref)) + 1e-12

        # (1) Exact-math check (float64): the per-level operators (factored and,
        #     where used, folded) reproduce the rfft/mix/irfft + wavelet pyramid
        #     reference to machine precision.
        fo = build_factored_ops(params, cfg["N"])
        fa_err = float(np.max(np.abs(factored_forward_np(xn, fo, cfg["N"]) - ref))
                       / denom)
        assert fa_err < 1e-9, f"factored operator math mismatch: {fa_err}"
        if path in ("fused", "auto"):
            fol = build_folded_ops(params, cfg["N"])
            fd_err = float(np.max(np.abs(folded_forward_np(xn, fol, cfg["N"]) - ref))
                           / denom)
            assert fd_err < 1e-9, f"folded operator math mismatch: {fd_err}"

        # (2) Device check: Pallas kernels vs the float64 reference.  Tolerance
        #     absorbs bf16 weight/activation rounding (f32 accumulation) across
        #     the <= 2*log2(N)+1 deep matmul chain; the operator algebra itself
        #     is validated exactly above.
        fwd = make_forward(params, cfg["N"], path=path, param_dtype=pdt,
                           vmem_budget_override=override)
        out = jax.block_until_ready(fwd(x))
        assert out.shape == x.shape, out.shape
        dev_err = float(np.max(np.abs(np.asarray(out, np.float64) - ref)) / denom)
        assert dev_err < tol, f"{path}/{np.dtype(pdt)}: device mismatch {dev_err}"

    print("KERNEL_OK")
</pallas_src>

<mosaic_0001>
module attributes {stable_mosaic.version = 11 : i64} {
  func.func @kernel(%arg0: memref<2x64xf32, #tpu.memory_space<vmem>>, %arg1: memref<64x32xf32, #tpu.memory_space<vmem>>, %arg2: memref<64x32xf32, #tpu.memory_space<vmem>>, %arg3: memref<64x32xf32, #tpu.memory_space<vmem>>, %arg4: memref<32x16xf32, #tpu.memory_space<vmem>>, %arg5: memref<32x16xf32, #tpu.memory_space<vmem>>, %arg6: memref<32x16xf32, #tpu.memory_space<vmem>>, %arg7: memref<16x8xf32, #tpu.memory_space<vmem>>, %arg8: memref<16x8xf32, #tpu.memory_space<vmem>>, %arg9: memref<16x8xf32, #tpu.memory_space<vmem>>, %arg10: memref<8x4xf32, #tpu.memory_space<vmem>>, %arg11: memref<8x4xf32, #tpu.memory_space<vmem>>, %arg12: memref<8x4xf32, #tpu.memory_space<vmem>>, %arg13: memref<1x4xf32, #tpu.memory_space<vmem>>, %arg14: memref<32x64xf32, #tpu.memory_space<vmem>>, %arg15: memref<32x64xf32, #tpu.memory_space<vmem>>, %arg16: memref<16x32xf32, #tpu.memory_space<vmem>>, %arg17: memref<16x32xf32, #tpu.memory_space<vmem>>, %arg18: memref<8x16xf32, #tpu.memory_space<vmem>>, %arg19: memref<8x16xf32, #tpu.memory_space<vmem>>, %arg20: memref<4x8xf32, #tpu.memory_space<vmem>>, %arg21: memref<4x8xf32, #tpu.memory_space<vmem>>, %arg22: memref<2x64xf32, #tpu.memory_space<vmem>>) attributes {dimension_semantics = [], scalar_prefetch = 0 : i64, scratch_operands = 0 : i64, tpu.core_type = #tpu.core_type<tc>} {
    %c0 = arith.constant 0 : index
    %c0_0 = arith.constant 0 : index
    %0 = vector.load %arg0[%c0, %c0_0] : memref<2x64xf32, #tpu.memory_space<vmem>>, vector<2x64xf32>
    %c0_1 = arith.constant 0 : index
    %c0_2 = arith.constant 0 : index
    %1 = vector.load %arg1[%c0_1, %c0_2] : memref<64x32xf32, #tpu.memory_space<vmem>>, vector<64x32xf32>
    %cst = arith.constant dense<0.000000e+00> : vector<2x32xf32>
    %2 = tpu.matmul %0, %1, %cst {dimension_numbers = #tpu.dot_dimension_numbers<[1], [0], [0], [1], [0, 0, 1, 1], [], []>} : vector<2x64xf32>, vector<64x32xf32>, vector<2x32xf32> -> vector<2x32xf32>
    %c0_3 = arith.constant 0 : index
    %c0_4 = arith.constant 0 : index
    %3 = vector.load %arg2[%c0_3, %c0_4] : memref<64x32xf32, #tpu.memory_space<vmem>>, vector<64x32xf32>
    %cst_5 = arith.constant dense<0.000000e+00> : vector<2x32xf32>
    %4 = tpu.matmul %0, %3, %cst_5 {dimension_numbers = #tpu.dot_dimension_numbers<[1], [0], [0], [1], [0, 0, 1, 1], [], []>} : vector<2x64xf32>, vector<64x32xf32>, vector<2x32xf32> -> vector<2x32xf32>
    %c0_6 = arith.constant 0 : index
    %c0_7 = arith.constant 0 : index
    %5 = vector.load %arg3[%c0_6, %c0_7] : memref<64x32xf32, #tpu.memory_space<vmem>>, vector<64x32xf32>
    %cst_8 = arith.constant dense<0.000000e+00> : vector<2x32xf32>
    %6 = tpu.matmul %0, %5, %cst_8 {dimension_numbers = #tpu.dot_dimension_numbers<[1], [0], [0], [1], [0, 0, 1, 1], [], []>} : vector<2x64xf32>, vector<64x32xf32>, vector<2x32xf32> -> vector<2x32xf32>
    %c0_9 = arith.constant 0 : index
    %c0_10 = arith.constant 0 : index
    %7 = vector.load %arg4[%c0_9, %c0_10] : memref<32x16xf32, #tpu.memory_space<vmem>>, vector<32x16xf32>
    %cst_11 = arith.constant dense<0.000000e+00> : vector<2x16xf32>
    %8 = tpu.matmul %6, %7, %cst_11 {dimension_numbers = #tpu.dot_dimension_numbers<[1], [0], [0], [1], [0, 0, 1, 1], [], []>} : vector<2x32xf32>, vector<32x16xf32>, vector<2x16xf32> -> vector<2x16xf32>
    %c0_12 = arith.constant 0 : index
    %c0_13 = arith.constant 0 : index
    %9 = vector.load %arg5[%c0_12, %c0_13] : memref<32x16xf32, #tpu.memory_space<vmem>>, vector<32x16xf32>
    %cst_14 = arith.constant dense<0.000000e+00> : vector<2x16xf32>
    %10 = tpu.matmul %6, %9, %cst_14 {dimension_numbers = #tpu.dot_dimension_numbers<[1], [0], [0], [1], [0, 0, 1, 1], [], []>} : vector<2x32xf32>, vector<32x16xf32>, vector<2x16xf32> -> vector<2x16xf32>
    %c0_15 = arith.constant 0 : index
    %c0_16 = arith.constant 0 : index
    %11 = vector.load %arg6[%c0_15, %c0_16] : memref<32x16xf32, #tpu.memory_space<vmem>>, vector<32x16xf32>
    %cst_17 = arith.constant dense<0.000000e+00> : vector<2x16xf32>
    %12 = tpu.matmul %6, %11, %cst_17 {dimension_numbers = #tpu.dot_dimension_numbers<[1], [0], [0], [1], [0, 0, 1, 1], [], []>} : vector<2x32xf32>, vector<32x16xf32>, vector<2x16xf32> -> vector<2x16xf32>
    %c0_18 = arith.constant 0 : index
    %c0_19 = arith.constant 0 : index
    %13 = vector.load %arg7[%c0_18, %c0_19] : memref<16x8xf32, #tpu.memory_space<vmem>>, vector<16x8xf32>
    %cst_20 = arith.constant dense<0.000000e+00> : vector<2x8xf32>
    %14 = tpu.matmul %12, %13, %cst_20 {dimension_numbers = #tpu.dot_dimension_numbers<[1], [0], [0], [1], [0, 0, 1, 1], [], []>} : vector<2x16xf32>, vector<16x8xf32>, vector<2x8xf32> -> vector<2x8xf32>
    %c0_21 = arith.constant 0 : index
    %c0_22 = arith.constant 0 : index
    %15 = vector.load %arg8[%c0_21, %c0_22] : memref<16x8xf32, #tpu.memory_space<vmem>>, vector<16x8xf32>
    %cst_23 = arith.constant dense<0.000000e+00> : vector<2x8xf32>
    %16 = tpu.matmul %12, %15, %cst_23 {dimension_numbers = #tpu.dot_dimension_numbers<[1], [0], [0], [1], [0, 0, 1, 1], [], []>} : vector<2x16xf32>, vector<16x8xf32>, vector<2x8xf32> -> vector<2x8xf32>
    %c0_24 = arith.constant 0 : index
    %c0_25 = arith.constant 0 : index
    %17 = vector.load %arg9[%c0_24, %c0_25] : memref<16x8xf32, #tpu.memory_space<vmem>>, vector<16x8xf32>
    %cst_26 = arith.constant dense<0.000000e+00> : vector<2x8xf32>
    %18 = tpu.matmul %12, %17, %cst_26 {dimension_numbers = #tpu.dot_dimension_numbers<[1], [0], [0], [1], [0, 0, 1, 1], [], []>} : vector<2x16xf32>, vector<16x8xf32>, vector<2x8xf32> -> vector<2x8xf32>
    %c0_27 = arith.constant 0 : index
    %c0_28 = arith.constant 0 : index
    %19 = vector.load %arg10[%c0_27, %c0_28] : memref<8x4xf32, #tpu.memory_space<vmem>>, vector<8x4xf32>
    %cst_29 = arith.constant dense<0.000000e+00> : vector<2x4xf32>
    %20 = tpu.matmul %18, %19, %cst_29 {dimension_numbers = #tpu.dot_dimension_numbers<[1], [0], [0], [1], [0, 0, 1, 1], [], []>} : vector<2x8xf32>, vector<8x4xf32>, vector<2x4xf32> -> vector<2x4xf32>
    %c0_30 = arith.constant 0 : index
    %c0_31 = arith.constant 0 : index
    %21 = vector.load %arg11[%c0_30, %c0_31] : memref<8x4xf32, #tpu.memory_space<vmem>>, vector<8x4xf32>
    %cst_32 = arith.constant dense<0.000000e+00> : vector<2x4xf32>
    %22 = tpu.matmul %18, %21, %cst_32 {dimension_numbers = #tpu.dot_dimension_numbers<[1], [0], [0], [1], [0, 0, 1, 1], [], []>} : vector<2x8xf32>, vector<8x4xf32>, vector<2x4xf32> -> vector<2x4xf32>
    %c0_33 = arith.constant 0 : index
    %c0_34 = arith.constant 0 : index
    %23 = vector.load %arg12[%c0_33, %c0_34] : memref<8x4xf32, #tpu.memory_space<vmem>>, vector<8x4xf32>
    %cst_35 = arith.constant dense<0.000000e+00> : vector<2x4xf32>
    %24 = tpu.matmul %18, %23, %cst_35 {dimension_numbers = #tpu.dot_dimension_numbers<[1], [0], [0], [1], [0, 0, 1, 1], [], []>} : vector<2x8xf32>, vector<8x4xf32>, vector<2x4xf32> -> vector<2x4xf32>
    %c0_36 = arith.constant 0 : index
    %c0_37 = arith.constant 0 : index
    %25 = vector.load %arg13[%c0_36, %c0_37] : memref<1x4xf32, #tpu.memory_space<vmem>>, vector<1x4xf32>
    %26 = vector.broadcast %25 : vector<1x4xf32> to vector<2x4xf32>
    %27 = arith.addf %24, %26 : vector<2x4xf32>
    %28 = arith.addf %27, %22 : vector<2x4xf32>
    %c0_38 = arith.constant 0 : index
    %c0_39 = arith.constant 0 : index
    %29 = vector.load %arg20[%c0_38, %c0_39] : memref<4x8xf32, #tpu.memory_space<vmem>>, vector<4x8xf32>
    %cst_40 = arith.constant dense<0.000000e+00> : vector<2x8xf32>
    %30 = tpu.matmul %28, %29, %cst_40 {dimension_numbers = #tpu.dot_dimension_numbers<[1], [0], [0], [1], [0, 0, 1, 1], [], []>} : vector<2x4xf32>, vector<4x8xf32>, vector<2x8xf32> -> vector<2x8xf32>
    %c0_41 = arith.constant 0 : index
    %c0_42 = arith.constant 0 : index
    %31 = vector.load %arg21[%c0_41, %c0_42] : memref<4x8xf32, #tpu.memory_space<vmem>>, vector<4x8xf32>
    %cst_43 = arith.constant dense<0.000000e+00> : vector<2x8xf32>
    %32 = tpu.matmul %20, %31, %cst_43 {dimension_numbers = #tpu.dot_dimension_numbers<[1], [0], [0], [1], [0, 0, 1, 1], [], []>} : vector<2x4xf32>, vector<4x8xf32>, vector<2x8xf32> -> vector<2x8xf32>
    %33 = arith.addf %30, %32 : vector<2x8xf32>
    %34 = arith.addf %33, %16 : vector<2x8xf32>
    %c0_44 = arith.constant 0 : index
    %c0_45 = arith.constant 0 : index
    %35 = vector.load %arg18[%c0_44, %c0_45] : memref<8x16xf32, #tpu.memory_space<vmem>>, vector<8x16xf32>
    %cst_46 = arith.constant dense<0.000000e+00> : vector<2x16xf32>
    %36 = tpu.matmul %34, %35, %cst_46 {dimension_numbers = #tpu.dot_dimension_numbers<[1], [0], [0], [1], [0, 0, 1, 1], [], []>} : vector<2x8xf32>, vector<8x16xf32>, vector<2x16xf32> -> vector<2x16xf32>
    %c0_47 = arith.constant 0 : index
    %c0_48 = arith.constant 0 : index
    %37 = vector.load %arg19[%c0_47, %c0_48] : memref<8x16xf32, #tpu.memory_space<vmem>>, vector<8x16xf32>
    %cst_49 = arith.constant dense<0.000000e+00> : vector<2x16xf32>
    %38 = tpu.matmul %14, %37, %cst_49 {dimension_numbers = #tpu.dot_dimension_numbers<[1], [0], [0], [1], [0, 0, 1, 1], [], []>} : vector<2x8xf32>, vector<8x16xf32>, vector<2x16xf32> -> vector<2x16xf32>
    %39 = arith.addf %36, %38 : vector<2x16xf32>
    %40 = arith.addf %39, %10 : vector<2x16xf32>
    %c0_50 = arith.constant 0 : index
    %c0_51 = arith.constant 0 : index
    %41 = vector.load %arg16[%c0_50, %c0_51] : memref<16x32xf32, #tpu.memory_space<vmem>>, vector<16x32xf32>
    %cst_52 = arith.constant dense<0.000000e+00> : vector<2x32xf32>
    %42 = tpu.matmul %40, %41, %cst_52 {dimension_numbers = #tpu.dot_dimension_numbers<[1], [0], [0], [1], [0, 0, 1, 1], [], []>} : vector<2x16xf32>, vector<16x32xf32>, vector<2x32xf32> -> vector<2x32xf32>
    %c0_53 = arith.constant 0 : index
    %c0_54 = arith.constant 0 : index
    %43 = vector.load %arg17[%c0_53, %c0_54] : memref<16x32xf32, #tpu.memory_space<vmem>>, vector<16x32xf32>
    %cst_55 = arith.constant dense<0.000000e+00> : vector<2x32xf32>
    %44 = tpu.matmul %8, %43, %cst_55 {dimension_numbers = #tpu.dot_dimension_numbers<[1], [0], [0], [1], [0, 0, 1, 1], [], []>} : vector<2x16xf32>, vector<16x32xf32>, vector<2x32xf32> -> vector<2x32xf32>
    %45 = arith.addf %42, %44 : vector<2x32xf32>
    %46 = arith.addf %45, %4 : vector<2x32xf32>
    %c0_56 = arith.constant 0 : index
    %c0_57 = arith.constant 0 : index
    %47 = vector.load %arg14[%c0_56, %c0_57] : memref<32x64xf32, #tpu.memory_space<vmem>>, vector<32x64xf32>
    %cst_58 = arith.constant dense<0.000000e+00> : vector<2x64xf32>
    %48 = tpu.matmul %46, %47, %cst_58 {dimension_numbers = #tpu.dot_dimension_numbers<[1], [0], [0], [1], [0, 0, 1, 1], [], []>} : vector<2x32xf32>, vector<32x64xf32>, vector<2x64xf32> -> vector<2x64xf32>
    %c0_59 = arith.constant 0 : index
    %c0_60 = arith.constant 0 : index
    %49 = vector.load %arg15[%c0_59, %c0_60] : memref<32x64xf32, #tpu.memory_space<vmem>>, vector<32x64xf32>
    %cst_61 = arith.constant dense<0.000000e+00> : vector<2x64xf32>
    %50 = tpu.matmul %2, %49, %cst_61 {dimension_numbers = #tpu.dot_dimension_numbers<[1], [0], [0], [1], [0, 0, 1, 1], [], []>} : vector<2x32xf32>, vector<32x64xf32>, vector<2x64xf32> -> vector<2x64xf32>
    %51 = arith.addf %48, %50 : vector<2x64xf32>
    %c0_62 = arith.constant 0 : index
    %c0_63 = arith.constant 0 : index
    %52 = vector.load %arg22[%c0_62, %c0_63] : memref<2x64xf32, #tpu.memory_space<vmem>>, vector<2x64xf32>
    tpu.vector_store %arg22[%c0_62, %c0_63], %51 {strides = array<i32>} : memref<2x64xf32, #tpu.memory_space<vmem>>, vector<2x64xf32>,
    return
  }
}

</mosaic_0001>

<llo_original>
// kernel: fwd.1
$region0: #{fwd.1}
  #allocation0 [shape = 'u32[]', space=smem, size = 0x4, offset = 0x4, fixed_abs, tag = 'smem constant byte address 0x4 - core index']
  #allocation1 [shape = 'u32[144,128]{1,0:T(1,128)}', space=vmem, size = 0x12000, scoped, tag = 'internal scratch']
  %s0 = inlined_call_operand.vmem [shape: f32[2,64], index: 0, kind: input, shape index: {}]
  %s1 = inlined_call_operand.hbm [shape: f32[64,32], index: 1, kind: input, shape index: {}]
  %s2 = inlined_call_operand.hbm [shape: f32[64,32], index: 2, kind: input, shape index: {}]
  %s3 = inlined_call_operand.vmem [shape: f32[64,32], index: 3, kind: input, shape index: {}]
  %s4 = inlined_call_operand.hbm [shape: f32[32,16], index: 4, kind: input, shape index: {}]
  %s5 = inlined_call_operand.hbm [shape: f32[32,16], index: 5, kind: input, shape index: {}]
  %s6 = inlined_call_operand.hbm [shape: f32[32,16], index: 6, kind: input, shape index: {}]
  %s7 = inlined_call_operand.hbm [shape: f32[16,8], index: 7, kind: input, shape index: {}]
  %s8 = inlined_call_operand.hbm [shape: f32[16,8], index: 8, kind: input, shape index: {}]
  %s9 = inlined_call_operand.hbm [shape: f32[16,8], index: 9, kind: input, shape index: {}]
  %s10 = inlined_call_operand.hbm [shape: f32[8,4], index: 10, kind: input, shape index: {}]
  %s11 = inlined_call_operand.hbm [shape: f32[8,4], index: 11, kind: input, shape index: {}]
  %s12 = inlined_call_operand.hbm [shape: f32[8,4], index: 12, kind: input, shape index: {}]
  %s13 = inlined_call_operand.hbm [shape: f32[1,4], index: 13, kind: input, shape index: {}]
  %s14 = inlined_call_operand.hbm [shape: f32[32,64], index: 14, kind: input, shape index: {}]
  %s15 = inlined_call_operand.vmem [shape: f32[32,64], index: 15, kind: input, shape index: {}]
  %s16 = inlined_call_operand.hbm [shape: f32[16,32], index: 16, kind: input, shape index: {}]
  %s17 = inlined_call_operand.hbm [shape: f32[16,32], index: 17, kind: input, shape index: {}]
  %s18 = inlined_call_operand.hbm [shape: f32[8,16], index: 18, kind: input, shape index: {}]
  %s19 = inlined_call_operand.vmem [shape: f32[8,16], index: 19, kind: input, shape index: {}]
  %s20 = inlined_call_operand.hbm [shape: f32[4,8], index: 20, kind: input, shape index: {}]
  %s21 = inlined_call_operand.vmem [shape: f32[4,8], index: 21, kind: input, shape index: {}]
  %s22 = inlined_call_operand.vmem [shape: f32[2,64], index: 22, kind: output, shape index: {}]
  %s23 = sld [smem:[#allocation0]]
  $region166: #{fwd.1} parent=0
    _
  %s25 = ssub.s32 1, %s23
  %s26 = scalar_select 0, %s25, %s23
  $region1: #{fwd.1} parent=0
    #allocation2 [shape = 'u8[32768]{0}', space=vmem, size = 0x8000, scoped, tag = 'input window, operand 1, single buffered']
    #allocation3 [shape = 's32[1]{0}', space=sflag, size = 0x4, scoped, tag = 'scoped memory for fwd.1']
    #allocation4 [shape = 'u8[32768]{0}', space=vmem, size = 0x8000, scoped, tag = 'input window, operand 2, single buffered']
    #allocation5 [shape = 's32[1]{0}', space=sflag, size = 0x4, scoped, tag = 'scoped memory for fwd.1']
    #allocation6 [shape = 'u8[16384]{0}', space=vmem, size = 0x4000, scoped, tag = 'input window, operand 4, single buffered']
    #allocation7 [shape = 'u8[16384]{0}', space=vmem, size = 0x4000, scoped, tag = 'input window, operand 5, single buffered']
    #allocation8 [shape = 's32[1]{0}', space=sflag, size = 0x4, scoped, tag = 'scoped memory for fwd.1']
    #allocation9 [shape = 'u8[16384]{0}', space=vmem, size = 0x4000, scoped, tag = 'input window, operand 6, single buffered']
    #allocation10 [shape = 'u8[8192]{0}', space=vmem, size = 0x2000, scoped, tag = 'input window, operand 7, single buffered']
    #allocation11 [shape = 's32[1]{0}', space=sflag, size = 0x4, scoped, tag = 'scoped memory for fwd.1']
    #allocation12 [shape = 'u8[8192]{0}', space=vmem, size = 0x2000, scoped, tag = 'input window, operand 8, single buffered']
    #allocation13 [shape = 'u8[8192]{0}', space=vmem, size = 0x2000, scoped, tag = 'input window, operand 9, single buffered']
    #allocation14 [shape = 's32[1]{0}', space=sflag, size = 0x4, scoped, tag = 'scoped memory for fwd.1']
    #allocation15 [shape = 'u8[4096]{0}', space=vmem, size = 0x1000, scoped, tag = 'input window, operand 10, single buffered']
    #allocation16 [shape = 'u8[4096]{0}', space=vmem, size = 0x1000, scoped, tag = 'input window, operand 11, single buffered']
    #allocation17 [shape = 's32[1]{0}', space=sflag, size = 0x4, scoped, tag = 'scoped memory for fwd.1']
    #allocation18 [shape = 'u8[4096]{0}', space=vmem, size = 0x1000, scoped, tag = 'input window, operand 12, single buffered']
    #allocation19 [shape = 'u8[512]{0}', space=vmem, size = 0x400, scoped, tag = 'input window, operand 13, single buffered']
    #allocation20 [shape = 's32[1]{0}', space=sflag, size = 0x4, scoped, tag = 'scoped memory for fwd.1']
    #allocation21 [shape = 'u8[16384]{0}', space=vmem, size = 0x4000, scoped, tag = 'input window, operand 14, single buffered']
    #allocation22 [shape = 'u8[8192]{0}', space=vmem, size = 0x2000, scoped, tag = 'input window, operand 16, single buffered']
    #allocation23 [shape = 's32[1]{0}', space=sflag, size = 0x4, scoped, tag = 'scoped memory for fwd.1']
    #allocation24 [shape = 'u8[8192]{0}', space=vmem, size = 0x2000, scoped, tag = 'input window, operand 17, single buffered']
    #allocation25 [shape = 'u8[4096]{0}', space=vmem, size = 0x1000, scoped, tag = 'input window, operand 18, single buffered']
    #allocation26 [shape = 's32[1]{0}', space=sflag, size = 0x4, scoped, tag = 'scoped memory for fwd.1']
    #allocation27 [shape = 'u8[2048]{0}', space=vmem, size = 0x800, scoped, tag = 'input window, operand 20, single buffered']
    %27 = vsyncpa [#allocation3], 0
    %28 = vsyncpa [#allocation5], 0
    %29 = vsyncpa [#allocation8], 0
    %30 = vsyncpa [#allocation11], 0
    %31 = vsyncpa [#allocation14], 0
    %32 = vsyncpa [#allocation17], 0
    %33 = vsyncpa [#allocation20], 0
    %34 = vsyncpa [#allocation23], 0
    %35 = vsyncpa [#allocation26], 0
    // Predicated region
    $region2: #{fwd.1} parent=1 // pred_check
      _
    $region3: #{fwd.1} parent=1 // pred_check_branch
      %37 = sbr.rel (0) target = $region5
    $region4: #{fwd.1} parent=1 // pred_region
      _
    $region5: #{fwd.1} parent=1 // pred_fallthru
      _
    // Predicated region
    $region6: #{fwd.1} parent=1 // pred_check
      _
    $region7: #{fwd.1} parent=1 // pred_check_branch
      %39 = sbr.rel (0) target = $region9
    $region8: #{fwd.1} parent=1 // pred_region
      %s41 = ssub.s32 1024, 1024
      %42 = vsyncadd [#allocation3], %s41
      %s43 = sshll.u32 [#allocation2], 4
      %s44 = int_to_ptr.vmem [resolvable:$true] %s43
      %49 = dma.hbm_to_vmem [thread:$0]  %s1, 1024, %s44, [#allocation3], 128, 128, 8
    $region9: #{fwd.1} parent=1 // pred_fallthru
      _
    // Predicated region
    $region10: #{fwd.1} parent=1 // pred_check
      _
    $region11: #{fwd.1} parent=1 // pred_check_branch
      %51 = sbr.rel (0) target = $region13
    $region12: #{fwd.1} parent=1 // pred_region
      %s53 = ssub.s32 1024, 1024
      %54 = vsyncadd [#allocation5], %s53
      %s55 = sshll.u32 [#allocation4], 4
      %s56 = int_to_ptr.vmem [resolvable:$true] %s55
      %61 = dma.hbm_to_vmem [thread:$0]  %s2, 1024, %s56, [#allocation5], 128, 128, 8
    $region13: #{fwd.1} parent=1 // pred_fallthru
      _
    // Predicated region
    $region14: #{fwd.1} parent=1 // pred_check
      _
    $region15: #{fwd.1} parent=1 // pred_check_branch
      %63 = sbr.rel (0) target = $region17
    $region16: #{fwd.1} parent=1 // pred_region
      _
    $region17: #{fwd.1} parent=1 // pred_fallthru
      _
    // Predicated region
    $region18: #{fwd.1} parent=1 // pred_check
      _
    $region19: #{fwd.1} parent=1 // pred_check_branch
      %65 = sbr.rel (0) target = $region21
    $region20: #{fwd.1} parent=1 // pred_region
      %s67 = ssub.s32 512, 512
      %68 = vsyncadd [#allocation5], %s67
      %s69 = sshll.u32 [#allocation6], 4
      %s70 = int_to_ptr.vmem [resolvable:$true] %s69
      %75 = dma.hbm_to_vmem [thread:$0]  %s4, 512, %s70, [#allocation5], 128, 128, 8
    $region21: #{fwd.1} parent=1 // pred_fallthru
      _
    // Predicated region
    $region22: #{fwd.1} parent=1 // pred_check
      _
    $region23: #{fwd.1} parent=1 // pred_check_branch
      %77 = sbr.rel (0) target = $region25
    $region24: #{fwd.1} parent=1 // pred_region
      %s79 = ssub.s32 512, 512
      %80 = vsyncadd [#allocation8], %s79
      %s81 = sshll.u32 [#allocation7], 4
      %s82 = int_to_ptr.vmem [resolvable:$true] %s81
      %87 = dma.hbm_to_vmem [thread:$0]  %s5, 512, %s82, [#allocation8], 128, 128, 8
    $region25: #{fwd.1} parent=1 // pred_fallthru
      _
    // Predicated region
    $region26: #{fwd.1} parent=1 // pred_check
      _
    $region27: #{fwd.1} parent=1 // pred_check_branch
      %89 = sbr.rel (0) target = $region29
    $region28: #{fwd.1} parent=1 // pred_region
      %s91 = ssub.s32 512, 512
      %92 = vsyncadd [#allocation8], %s91
      %s93 = sshll.u32 [#allocation9], 4
      %s94 = int_to_ptr.vmem [resolvable:$true] %s93
      %99 = dma.hbm_to_vmem [thread:$0]  %s6, 512, %s94, [#allocation8], 128, 128, 8
    $region29: #{fwd.1} parent=1 // pred_fallthru
      _
    // Predicated region
    $region30: #{fwd.1} parent=1 // pred_check
      _
    $region31: #{fwd.1} parent=1 // pred_check_branch
      %101 = sbr.rel (0) target = $region33
    $region32: #{fwd.1} parent=1 // pred_region
      %s103 = ssub.s32 256, 256
      %104 = vsyncadd [#allocation11], %s103
      %s105 = sshll.u32 [#allocation10], 4
      %s106 = int_to_ptr.vmem [resolvable:$true] %s105
      %111 = dma.hbm_to_vmem [thread:$0]  %s7, 256, %s106, [#allocation11], 128, 128, 8
    $region33: #{fwd.1} parent=1 // pred_fallthru
      _
    // Predicated region
    $region34: #{fwd.1} parent=1 // pred_check
      _
    $region35: #{fwd.1} parent=1 // pred_check_branch
      %113 = sbr.rel (0) target = $region37
    $region36: #{fwd.1} parent=1 // pred_region
      %s115 = ssub.s32 256, 256
      %116 = vsyncadd [#allocation11], %s115
      %s117 = sshll.u32 [#allocation12], 4
      %s118 = int_to_ptr.vmem [resolvable:$true] %s117
      %123 = dma.hbm_to_vmem [thread:$0]  %s8, 256, %s118, [#allocation11], 128, 128, 8
    $region37: #{fwd.1} parent=1 // pred_fallthru
      _
    // Predicated region
    $region38: #{fwd.1} parent=1 // pred_check
      _
    $region39: #{fwd.1} parent=1 // pred_check_branch
      %125 = sbr.rel (0) target = $region41
    $region40: #{fwd.1} parent=1 // pred_region
      %s127 = ssub.s32 256, 256
      %128 = vsyncadd [#allocation14], %s127
      %s129 = sshll.u32 [#allocation13], 4
      %s130 = int_to_ptr.vmem [resolvable:$true] %s129
      %135 = dma.hbm_to_vmem [thread:$0]  %s9, 256, %s130, [#allocation14], 128, 128, 8
    $region41: #{fwd.1} parent=1 // pred_fallthru
      _
    // Predicated region
    $region42: #{fwd.1} parent=1 // pred_check
      _
    $region43: #{fwd.1} parent=1 // pred_check_branch
      %137 = sbr.rel (0) target = $region45
    $region44: #{fwd.1} parent=1 // pred_region
      %s139 = ssub.s32 128, 128
      %140 = vsyncadd [#allocation14], %s139
      %s142 = sshll.u32 [#allocation15], 4
      %s143 = int_to_ptr.vmem [resolvable:$true] %s142
      %145 = dma.hbm_to_vmem [thread:$0]  %s10, 128, %s143, [#allocation14]
    $region45: #{fwd.1} parent=1 // pred_fallthru
      _
    // Predicated region
    $region46: #{fwd.1} parent=1 // pred_check
      _
    $region47: #{fwd.1} parent=1 // pred_check_branch
      %147 = sbr.rel (0) target = $region49
    $region48: #{fwd.1} parent=1 // pred_region
      %s149 = ssub.s32 128, 128
      %150 = vsyncadd [#allocation17], %s149
      %s152 = sshll.u32 [#allocation16], 4
      %s153 = int_to_ptr.vmem [resolvable:$true] %s152
      %155 = dma.hbm_to_vmem [thread:$0]  %s11, 128, %s153, [#allocation17]
    $region49: #{fwd.1} parent=1 // pred_fallthru
      _
    // Predicated region
    $region50: #{fwd.1} parent=1 // pred_check
      _
    $region51: #{fwd.1} parent=1 // pred_check_branch
      %157 = sbr.rel (0) target = $region53
    $region52: #{fwd.1} parent=1 // pred_region
      %s159 = ssub.s32 128, 128
      %160 = vsyncadd [#allocation17], %s159
      %s162 = sshll.u32 [#allocation18], 4
      %s163 = int_to_ptr.vmem [resolvable:$true] %s162
      %165 = dma.hbm_to_vmem [thread:$0]  %s12, 128, %s163, [#allocation17]
    $region53: #{fwd.1} parent=1 // pred_fallthru
      _
    // Predicated region
    $region54: #{fwd.1} parent=1 // pred_check
      _
    $region55: #{fwd.1} parent=1 // pred_check_branch
      %167 = sbr.rel (0) target = $region57
    $region56: #{fwd.1} parent=1 // pred_region
      %s169 = ssub.s32 16, 16
      %170 = vsyncadd [#allocation20], %s169
      %s172 = sshll.u32 [#allocation19], 4
      %s173 = int_to_ptr.vmem [resolvable:$true] %s172
      %175 = dma.hbm_to_vmem [thread:$0]  %s13, 16, %s173, [#allocation20]
    $region57: #{fwd.1} parent=1 // pred_fallthru
      _
    // Predicated region
    $region58: #{fwd.1} parent=1 // pred_check
      _
    $region59: #{fwd.1} parent=1 // pred_check_branch
      %177 = sbr.rel (0) target = $region61
    $region60: #{fwd.1} parent=1 // pred_region
      %s179 = ssub.s32 512, 512
      %180 = vsyncadd [#allocation20], %s179
      %s181 = sshll.u32 [#allocation21], 4
      %s182 = int_to_ptr.vmem [resolvable:$true] %s181
      %187 = dma.hbm_to_vmem [thread:$0]  %s14, 512, %s182, [#allocation20], 128, 128, 8
    $region61: #{fwd.1} parent=1 // pred_fallthru
      _
    // Predicated region
    $region62: #{fwd.1} parent=1 // pred_check
      _
    $region63: #{fwd.1} parent=1 // pred_check_branch
      %189 = sbr.rel (0) target = $region65
    $region64: #{fwd.1} parent=1 // pred_region
      _
    $region65: #{fwd.1} parent=1 // pred_fallthru
      _
    // Predicated region
    $region66: #{fwd.1} parent=1 // pred_check
      _
    $region67: #{fwd.1} parent=1 // pred_check_branch
      %191 = sbr.rel (0) target = $region69
    $region68: #{fwd.1} parent=1 // pred_region
      %s193 = ssub.s32 256, 256
      %194 = vsyncadd [#allocation23], %s193
      %s195 = sshll.u32 [#allocation22], 4
      %s196 = int_to_ptr.vmem [resolvable:$true] %s195
      %201 = dma.hbm_to_vmem [thread:$0]  %s16, 256, %s196, [#allocation23], 128, 128, 8
    $region69: #{fwd.1} parent=1 // pred_fallthru
      _
    // Predicated region
    $region70: #{fwd.1} parent=1 // pred_check
      _
    $region71: #{fwd.1} parent=1 // pred_check_branch
      %203 = sbr.rel (0) target = $region73
    $region72: #{fwd.1} parent=1 // pred_region
      %s205 = ssub.s32 256, 256
      %206 = vsyncadd [#allocation23], %s205
      %s207 = sshll.u32 [#allocation24], 4
      %s208 = int_to_ptr.vmem [resolvable:$true] %s207
      %213 = dma.hbm_to_vmem [thread:$0]  %s17, 256, %s208, [#allocation23], 128, 128, 8
    $region73: #{fwd.1} parent=1 // pred_fallthru
      _
    // Predicated region
    $region74: #{fwd.1} parent=1 // pred_check
      _
    $region75: #{fwd.1} parent=1 // pred_check_branch
      %215 = sbr.rel (0) target = $region77
    $region76: #{fwd.1} parent=1 // pred_region
      %s217 = ssub.s32 128, 128
      %218 = vsyncadd [#allocation26], %s217
      %s220 = sshll.u32 [#allocation25], 4
      %s221 = int_to_ptr.vmem [resolvable:$true] %s220
      %223 = dma.hbm_to_vmem [thread:$0]  %s18, 128, %s221, [#allocation26]
    $region77: #{fwd.1} parent=1 // pred_fallthru
      _
    // Predicated region
    $region78: #{fwd.1} parent=1 // pred_check
      _
    $region79: #{fwd.1} parent=1 // pred_check_branch
      %225 = sbr.rel (0) target = $region81
    $region80: #{fwd.1} parent=1 // pred_region
      _
    $region81: #{fwd.1} parent=1 // pred_fallthru
      _
    // Predicated region
    $region82: #{fwd.1} parent=1 // pred_check
      _
    $region83: #{fwd.1} parent=1 // pred_check_branch
      %227 = sbr.rel (0) target = $region85
    $region84: #{fwd.1} parent=1 // pred_region
      %s229 = ssub.s32 64, 64
      %230 = vsyncadd [#allocation26], %s229
      %s232 = sshll.u32 [#allocation27], 4
      %s233 = int_to_ptr.vmem [resolvable:$true] %s232
      %235 = dma.hbm_to_vmem [thread:$0]  %s20, 64, %s233, [#allocation26]
    $region85: #{fwd.1} parent=1 // pred_fallthru
      _
    // Predicated region
    $region86: #{fwd.1} parent=1 // pred_check
      _
    $region87: #{fwd.1} parent=1 // pred_check_branch
      %237 = sbr.rel (0) target = $region89
    $region88: #{fwd.1} parent=1 // pred_region
      _
    $region89: #{fwd.1} parent=1 // pred_fallthru
      _
    // Predicated region
    $region90: #{fwd.1} parent=1 // pred_check
      _
    $region91: #{fwd.1} parent=1 // pred_check_branch
      %239 = sbr.rel (0) target = $region93
    $region92: #{fwd.1} parent=1 // pred_region
      %240 = dma.done [#allocation3], 1024
    $region93: #{fwd.1} parent=1 // pred_fallthru
      _
    // Predicated region
    $region94: #{fwd.1} parent=1 // pred_check
      _
    $region95: #{fwd.1} parent=1 // pred_check_branch
      %242 = sbr.rel (0) target = $region97
    $region96: #{fwd.1} parent=1 // pred_region
      %243 = dma.done [#allocation5], 1024
    $region97: #{fwd.1} parent=1 // pred_fallthru
      _
    // Predicated region
    $region98: #{fwd.1} parent=1 // pred_check
      _
    $region99: #{fwd.1} parent=1 // pred_check_branch
      %245 = sbr.rel (0) target = $region101
    $region100: #{fwd.1} parent=1 // pred_region
      %246 = dma.done [#allocation5], 512
    $region101: #{fwd.1} parent=1 // pred_fallthru
      _
    // Predicated region
    $region102: #{fwd.1} parent=1 // pred_check
      _
    $region103: #{fwd.1} parent=1 // pred_check_branch
      %248 = sbr.rel (0) target = $region105
    $region104: #{fwd.1} parent=1 // pred_region
      %249 = dma.done [#allocation8], 512
    $region105: #{fwd.1} parent=1 // pred_fallthru
      _
    // Predicated region
    $region106: #{fwd.1} parent=1 // pred_check
      _
    $region107: #{fwd.1} parent=1 // pred_check_branch
      %251 = sbr.rel (0) target = $region109
    $region108: #{fwd.1} parent=1 // pred_region
      %252 = dma.done [#allocation8], 512
    $region109: #{fwd.1} parent=1 // pred_fallthru
      _
    // Predicated region
    $region110: #{fwd.1} parent=1 // pred_check
      _
    $region111: #{fwd.1} parent=1 // pred_check_branch
      %254 = sbr.rel (0) target = $region113
    $region112: #{fwd.1} parent=1 // pred_region
      %255 = dma.done [#allocation11], 256
    $region113: #{fwd.1} parent=1 // pred_fallthru
      _
    // Predicated region
    $region114: #{fwd.1} parent=1 // pred_check
      _
    $region115: #{fwd.1} parent=1 // pred_check_branch
      %257 = sbr.rel (0) target = $region117
    $region116: #{fwd.1} parent=1 // pred_region
      %258 = dma.done [#allocation11], 256
    $region117: #{fwd.1} parent=1 // pred_fallthru
      _
    // Predicated region
    $region118: #{fwd.1} parent=1 // pred_check
      _
    $region119: #{fwd.1} parent=1 // pred_check_branch
      %260 = sbr.rel (0) target = $region121
    $region120: #{fwd.1} parent=1 // pred_region
      %261 = dma.done [#allocation14], 256
    $region121: #{fwd.1} parent=1 // pred_fallthru
      _
    // Predicated region
    $region122: #{fwd.1} parent=1 // pred_check
      _
    $region123: #{fwd.1} parent=1 // pred_check_branch
      %263 = sbr.rel (0) target = $region125
    $region124: #{fwd.1} parent=1 // pred_region
      %264 = dma.done [#allocation14], 128
    $region125: #{fwd.1} parent=1 // pred_fallthru
      _
    // Predicated region
    $region126: #{fwd.1} parent=1 // pred_check
      _
    $region127: #{fwd.1} parent=1 // pred_check_branch
      %266 = sbr.rel (0) target = $region129
    $region128: #{fwd.1} parent=1 // pred_region
      %267 = dma.done [#allocation17], 128
    $region129: #{fwd.1} parent=1 // pred_fallthru
      _
    // Predicated region
    $region130: #{fwd.1} parent=1 // pred_check
      _
    $region131: #{fwd.1} parent=1 // pred_check_branch
      %269 = sbr.rel (0) target = $region133
    $region132: #{fwd.1} parent=1 // pred_region
      %270 = dma.done [#allocation17], 128
    $region133: #{fwd.1} parent=1 // pred_fallthru
      _
    // Predicated region
    $region134: #{fwd.1} parent=1 // pred_check
      _
    $region135: #{fwd.1} parent=1 // pred_check_branch
      %272 = sbr.rel (0) target = $region137
    $region136: #{fwd.1} parent=1 // pred_region
      %273 = dma.done [#allocation20], 16
    $region137: #{fwd.1} parent=1 // pred_fallthru
      _
    // Predicated region
    $region138: #{fwd.1} parent=1 // pred_check
      _
    $region139: #{fwd.1} parent=1 // pred_check_branch
      %275 = sbr.rel (0) target = $region141
    $region140: #{fwd.1} parent=1 // pred_region
      %276 = dma.done [#allocation20], 512
    $region141: #{fwd.1} parent=1 // pred_fallthru
      _
    // Predicated region
    $region142: #{fwd.1} parent=1 // pred_check
      _
    $region143: #{fwd.1} parent=1 // pred_check_branch
      %278 = sbr.rel (0) target = $region145
    $region144: #{fwd.1} parent=1 // pred_region
      %279 = dma.done [#allocation23], 256
    $region145: #{fwd.1} parent=1 // pred_fallthru
      _
    // Predicated region
    $region146: #{fwd.1} parent=1 // pred_check
      _
    $region147: #{fwd.1} parent=1 // pred_check_branch
      %281 = sbr.rel (0) target = $region149
    $region148: #{fwd.1} parent=1 // pred_region
      %282 = dma.done [#allocation23], 256
    $region149: #{fwd.1} parent=1 // pred_fallthru
      _
    // Predicated region
    $region150: #{fwd.1} parent=1 // pred_check
      _
    $region151: #{fwd.1} parent=1 // pred_check_branch
      %284 = sbr.rel (0) target = $region153
    $region152: #{fwd.1} parent=1 // pred_region
      %285 = dma.done [#allocation26], 128
    $region153: #{fwd.1} parent=1 // pred_fallthru
      _
    // Predicated region
    $region154: #{fwd.1} parent=1 // pred_check
      _
    $region155: #{fwd.1} parent=1 // pred_check_branch
      %287 = sbr.rel (0) target = $region157
    $region156: #{fwd.1} parent=1 // pred_region
      %288 = dma.done [#allocation26], 64
    $region157: #{fwd.1} parent=1 // pred_fallthru
      _
    %v289 = vld [vmem:[%s0] sm:$0x3]
    %v290 = vld [vmem:[#allocation2] sm:$0xff]
    %v291 = vld [vmem:[#allocation2 + $0x8] sm:$0xff]
    %v292 = vld [vmem:[#allocation2 + $0x10] sm:$0xff]
    %v293 = vld [vmem:[#allocation2 + $0x18] sm:$0xff]
    %v294 = vld [vmem:[#allocation2 + $0x20] sm:$0xff]
    %v295 = vld [vmem:[#allocation2 + $0x28] sm:$0xff]
    %v296 = vld [vmem:[#allocation2 + $0x30] sm:$0xff]
    %v297 = vld [vmem:[#allocation2 + $0x38] sm:$0xff]
    %vm298 = vcmask 523264
    %v300 = vsel %vm298, %v289, 0
    %302 = vmatprep.subr.mxu0 0.0
    %303 = vmatpush1.msra.mxu0 0.0
    %304 = vmatprep.subr.mxu0 0.0
    %305 = vmatpush1.msra.mxu0 0.0
    %306 = vmatprep.subr.mxu0 0.0
    %307 = vmatpush1.msra.mxu0 0.0
    %308 = vmatprep.subr.mxu0 0.0
    %309 = vmatpush1.msra.mxu0 0.0
    %310 = vmatprep.subr.mxu0 0.0
    %311 = vmatpush1.msra.mxu0 0.0
    %312 = vmatprep.subr.mxu0 0.0
    %313 = vmatpush1.msra.mxu0 0.0
    %314 = vmatprep.subr.mxu0 0.0
    %315 = vmatpush1.msra.mxu0 0.0
    %316 = vmatprep.subr.mxu0 0.0
    %317 = vmatpush1.msra.mxu0 0.0
    %318 = vmatprep.subr.mxu0 0.0
    %319 = vmatpush1.msra.mxu0 %v297
    %320 = vmatprep.subr.mxu0 0.0
    %321 = vmatpush1.msra.mxu0 %v296
    %322 = vmatprep.subr.mxu0 0.0
    %323 = vmatpush1.msra.mxu0 %v295
    %324 = vmatprep.subr.mxu0 0.0
    %325 = vmatpush1.msra.mxu0 %v294
    %326 = vmatprep.subr.mxu0 0.0
    %327 = vmatpush1.msra.mxu0 %v293
    %328 = vmatprep.subr.mxu0 0.0
    %329 = vmatpush1.msra.mxu0 %v292
    %330 = vmatprep.subr.mxu0 0.0
    %331 = vmatpush1.msra.mxu0 %v291
    %332 = vmatprep.subr.mxu0 0.0
    %333 = vmatpush1.msra.mxu0 %v290
    %334 = vmatprep.subr.mxu0 0.0
    %335 = vmatpush2.msra.mxu0 0.0
    %336 = vmatprep.subr.mxu0 0.0
    %337 = vmatpush2.msra.mxu0 0.0
    %338 = vmatprep.subr.mxu0 0.0
    %339 = vmatpush2.msra.mxu0 0.0
    %340 = vmatprep.subr.mxu0 0.0
    %341 = vmatpush2.msra.mxu0 0.0
    %342 = vmatprep.subr.mxu0 0.0
    %343 = vmatpush2.msra.mxu0 0.0
    %344 = vmatprep.subr.mxu0 0.0
    %345 = vmatpush2.msra.mxu0 0.0
    %346 = vmatprep.subr.mxu0 0.0
    %347 = vmatpush2.msra.mxu0 0.0
    %348 = vmatprep.subr.mxu0 0.0
    %349 = vmatpush2.msra.mxu0 0.0
    %350 = vmatprep.subr.mxu0 0.0
    %351 = vmatpush2.msra.mxu0 0.0
    %352 = vmatprep.subr.mxu0 0.0
    %353 = vmatpush2.msra.mxu0 0.0
    %354 = vmatprep.subr.mxu0 0.0
    %355 = vmatpush2.msra.mxu0 0.0
    %356 = vmatprep.subr.mxu0 0.0
    %357 = vmatpush2.msra.mxu0 0.0
    %358 = vmatprep.subr.mxu0 0.0
    %359 = vmatpush2.msra.mxu0 0.0
    %360 = vmatprep.subr.mxu0 0.0
    %361 = vmatpush2.msra.mxu0 0.0
    %362 = vmatprep.subr.mxu0 0.0
    %363 = vmatpush2.msra.mxu0 0.0
    %364 = vmatprep.subr.mxu0 0.0
    %365 = vmatpush2.msra.mxu0 0.0
    %366 = vmatprep.mubr.f32.mxu0 0.0
    %367 = vmatmul.mubr.f32.gmra.mxu0 %v300
    %v368 = vpop.f32.mrf.mxu0
    %v369 = vadd.f32 0.0, %v368
    %v370 = vpop.f32.mrf.mxu0
    %371 = vdwg.mxu0
    %v372 = vld [vmem:[#allocation4] sm:$0xff]
    %v373 = vld [vmem:[#allocation4 + $0x8] sm:$0xff]
    %v374 = vld [vmem:[#allocation4 + $0x10] sm:$0xff]
    %v375 = vld [vmem:[#allocation4 + $0x18] sm:$0xff]
    %v376 = vld [vmem:[#allocation4 + $0x20] sm:$0xff]
    %v377 = vld [vmem:[#allocation4 + $0x28] sm:$0xff]
    %v378 = vld [vmem:[#allocation4 + $0x30] sm:$0xff]
    %v379 = vld [vmem:[#allocation4 + $0x38] sm:$0xff]
    %380 = vmatprep.subr.mxu0 0.0
    %381 = vmatpush1.msra.mxu0 0.0
    %382 = vmatprep.subr.mxu0 0.0
    %383 = vmatpush1.msra.mxu0 0.0
    %384 = vmatprep.subr.mxu0 0.0
    %385 = vmatpush1.msra.mxu0 0.0
    %386 = vmatprep.subr.mxu0 0.0
    %387 = vmatpush1.msra.mxu0 0.0
    %388 = vmatprep.subr.mxu0 0.0
    %389 = vmatpush1.msra.mxu0 0.0
    %390 = vmatprep.subr.mxu0 0.0
    %391 = vmatpush1.msra.mxu0 0.0
    %392 = vmatprep.subr.mxu0 0.0
    %393 = vmatpush1.msra.mxu0 0.0
    %394 = vmatprep.subr.mxu0 0.0
    %395 = vmatpush1.msra.mxu0 0.0
    %396 = vmatprep.subr.mxu0 0.0
    %397 = vmatpush1.msra.mxu0 %v379
    %398 = vmatprep.subr.mxu0 0.0
    %399 = vmatpush1.msra.mxu0 %v378
    %400 = vmatprep.subr.mxu0 0.0
    %401 = vmatpush1.msra.mxu0 %v377
    %402 = vmatprep.subr.mxu0 0.0
    %403 = vmatpush1.msra.mxu0 %v376
    %404 = vmatprep.subr.mxu0 0.0
    %405 = vmatpush1.msra.mxu0 %v375
    %406 = vmatprep.subr.mxu0 0.0
    %407 = vmatpush1.msra.mxu0 %v374
    %408 = vmatprep.subr.mxu0 0.0
    %409 = vmatpush1.msra.mxu0 %v373
    %410 = vmatprep.subr.mxu0 0.0
    %411 = vmatpush1.msra.mxu0 %v372
    %412 = vmatprep.subr.mxu0 0.0
    %413 = vmatpush2.msra.mxu0 0.0
    %414 = vmatprep.subr.mxu0 0.0
    %415 = vmatpush2.msra.mxu0 0.0
    %416 = vmatprep.subr.mxu0 0.0
    %417 = vmatpush2.msra.mxu0 0.0
    %418 = vmatprep.subr.mxu0 0.0
    %419 = vmatpush2.msra.mxu0 0.0
    %420 = vmatprep.subr.mxu0 0.0
    %421 = vmatpush2.msra.mxu0 0.0
    %422 = vmatprep.subr.mxu0 0.0
    %423 = vmatpush2.msra.mxu0 0.0
    %424 = vmatprep.subr.mxu0 0.0
    %425 = vmatpush2.msra.mxu0 0.0
    %426 = vmatprep.subr.mxu0 0.0
    %427 = vmatpush2.msra.mxu0 0.0
    %428 = vmatprep.subr.mxu0 0.0
    %429 = vmatpush2.msra.mxu0 0.0
    %430 = vmatprep.subr.mxu0 0.0
    %431 = vmatpush2.msra.mxu0 0.0
    %432 = vmatprep.subr.mxu0 0.0
    %433 = vmatpush2.msra.mxu0 0.0
    %434 = vmatprep.subr.mxu0 0.0
    %435 = vmatpush2.msra.mxu0 0.0
    %436 = vmatprep.subr.mxu0 0.0
    %437 = vmatpush2.msra.mxu0 0.0
    %438 = vmatprep.subr.mxu0 0.0
    %439 = vmatpush2.msra.mxu0 0.0
    %440 = vmatprep.subr.mxu0 0.0
    %441 = vmatpush2.msra.mxu0 0.0
    %442 = vmatprep.subr.mxu0 0.0
    %443 = vmatpush2.msra.mxu0 0.0
    %444 = vmatprep.mubr.f32.mxu0 0.0
    %445 = vmatmul.mubr.f32.gmra.mxu0 %v300
    %v446 = vpop.f32.mrf.mxu0
    %v447 = vadd.f32 0.0, %v446
    %v448 = vpop.f32.mrf.mxu0
    %449 = vdwg.mxu0
    %v450 = vld [vmem:[%s3] sm:$0xff]
    %v451 = vld [vmem:[%s3 + $0x8] sm:$0xff]
    %v452 = vld [vmem:[%s3 + $0x10] sm:$0xff]
    %v453 = vld [vmem:[%s3 + $0x18] sm:$0xff]
    %v454 = vld [vmem:[%s3 + $0x20] sm:$0xff]
    %v455 = vld [vmem:[%s3 + $0x28] sm:$0xff]
    %v456 = vld [vmem:[%s3 + $0x30] sm:$0xff]
    %v457 = vld [vmem:[%s3 + $0x38] sm:$0xff]
    %458 = vmatprep.subr.mxu0 0.0
    %459 = vmatpush1.msra.mxu0 0.0
    %460 = vmatprep.subr.mxu0 0.0
    %461 = vmatpush1.msra.mxu0 0.0
    %462 = vmatprep.subr.mxu0 0.0
    %463 = vmatpush1.msra.mxu0 0.0
    %464 = vmatprep.subr.mxu0 0.0
    %465 = vmatpush1.msra.mxu0 0.0
    %466 = vmatprep.subr.mxu0 0.0
    %467 = vmatpush1.msra.mxu0 0.0
    %468 = vmatprep.subr.mxu0 0.0
    %469 = vmatpush1.msra.mxu0 0.0
    %470 = vmatprep.subr.mxu0 0.0
    %471 = vmatpush1.msra.mxu0 0.0
    %472 = vmatprep.subr.mxu0 0.0
    %473 = vmatpush1.msra.mxu0 0.0
    %474 = vmatprep.subr.mxu0 0.0
    %475 = vmatpush1.msra.mxu0 %v457
    %476 = vmatprep.subr.mxu0 0.0
    %477 = vmatpush1.msra.mxu0 %v456
    %478 = vmatprep.subr.mxu0 0.0
    %479 = vmatpush1.msra.mxu0 %v455
    %480 = vmatprep.subr.mxu0 0.0
    %481 = vmatpush1.msra.mxu0 %v454
    %482 = vmatprep.subr.mxu0 0.0
    %483 = vmatpush1.msra.mxu0 %v453
    %484 = vmatprep.subr.mxu0 0.0
    %485 = vmatpush1.msra.mxu0 %v452
    %486 = vmatprep.subr.mxu0 0.0
    %487 = vmatpush1.msra.mxu0 %v451
    %488 = vmatprep.subr.mxu0 0.0
    %489 = vmatpush1.msra.mxu0 %v450
    %490 = vmatprep.subr.mxu0 0.0
    %491 = vmatpush2.msra.mxu0 0.0
    %492 = vmatprep.subr.mxu0 0.0
    %493 = vmatpush2.msra.mxu0 0.0
    %494 = vmatprep.subr.mxu0 0.0
    %495 = vmatpush2.msra.mxu0 0.0
    %496 = vmatprep.subr.mxu0 0.0
    %497 = vmatpush2.msra.mxu0 0.0
    %498 = vmatprep.subr.mxu0 0.0
    %499 = vmatpush2.msra.mxu0 0.0
    %500 = vmatprep.subr.mxu0 0.0
    %501 = vmatpush2.msra.mxu0 0.0
    %502 = vmatprep.subr.mxu0 0.0
    %503 = vmatpush2.msra.mxu0 0.0
    %504 = vmatprep.subr.mxu0 0.0
    %505 = vmatpush2.msra.mxu0 0.0
    %506 = vmatprep.subr.mxu0 0.0
    %507 = vmatpush2.msra.mxu0 0.0
    %508 = vmatprep.subr.mxu0 0.0
    %509 = vmatpush2.msra.mxu0 0.0
    %510 = vmatprep.subr.mxu0 0.0
    %511 = vmatpush2.msra.mxu0 0.0
    %512 = vmatprep.subr.mxu0 0.0
    %513 = vmatpush2.msra.mxu0 0.0
    %514 = vmatprep.subr.mxu0 0.0
    %515 = vmatpush2.msra.mxu0 0.0
    %516 = vmatprep.subr.mxu0 0.0
    %517 = vmatpush2.msra.mxu0 0.0
    %518 = vmatprep.subr.mxu0 0.0
    %519 = vmatpush2.msra.mxu0 0.0
    %520 = vmatprep.subr.mxu0 0.0
    %521 = vmatpush2.msra.mxu0 0.0
    %522 = vmatprep.mubr.f32.mxu0 0.0
    %523 = vmatmul.mubr.f32.gmra.mxu0 %v300
    %v524 = vpop.f32.mrf.mxu0
    %v525 = vadd.f32 0.0, %v524
    %v526 = vpop.f32.mrf.mxu0
    %527 = vdwg.mxu0
    %v528 = vld [vmem:[#allocation6] sm:$0xff]
    %v529 = vld [vmem:[#allocation6 + $0x8] sm:$0xff]
    %v530 = vld [vmem:[#allocation6 + $0x10] sm:$0xff]
    %v531 = vld [vmem:[#allocation6 + $0x18] sm:$0xff]
    %vm532 = vcmask 261120
    %v534 = vsel %vm532, %v525, 0
    %536 = vmatprep.subr.mxu0 0.0
    %537 = vmatpush1.msra.mxu0 0.0
    %538 = vmatprep.subr.mxu0 0.0
    %539 = vmatpush1.msra.mxu0 0.0
    %540 = vmatprep.subr.mxu0 0.0
    %541 = vmatpush1.msra.mxu0 0.0
    %542 = vmatprep.subr.mxu0 0.0
    %543 = vmatpush1.msra.mxu0 0.0
    %544 = vmatprep.subr.mxu0 0.0
    %545 = vmatpush1.msra.mxu0 0.0
    %546 = vmatprep.subr.mxu0 0.0
    %547 = vmatpush1.msra.mxu0 0.0
    %548 = vmatprep.subr.mxu0 0.0
    %549 = vmatpush1.msra.mxu0 0.0
    %550 = vmatprep.subr.mxu0 0.0
    %551 = vmatpush1.msra.mxu0 0.0
    %552 = vmatprep.subr.mxu0 0.0
    %553 = vmatpush1.msra.mxu0 0.0
    %554 = vmatprep.subr.mxu0 0.0
    %555 = vmatpush1.msra.mxu0 0.0
    %556 = vmatprep.subr.mxu0 0.0
    %557 = vmatpush1.msra.mxu0 0.0
    %558 = vmatprep.subr.mxu0 0.0
    %559 = vmatpush1.msra.mxu0 0.0
    %560 = vmatprep.subr.mxu0 0.0
    %561 = vmatpush1.msra.mxu0 %v531
    %562 = vmatprep.subr.mxu0 0.0
    %563 = vmatpush1.msra.mxu0 %v530
    %564 = vmatprep.subr.mxu0 0.0
    %565 = vmatpush1.msra.mxu0 %v529
    %566 = vmatprep.subr.mxu0 0.0
    %567 = vmatpush1.msra.mxu0 %v528
    %568 = vmatprep.subr.mxu0 0.0
    %569 = vmatpush2.msra.mxu0 0.0
    %570 = vmatprep.subr.mxu0 0.0
    %571 = vmatpush2.msra.mxu0 0.0
    %572 = vmatprep.subr.mxu0 0.0
    %573 = vmatpush2.msra.mxu0 0.0
    %574 = vmatprep.subr.mxu0 0.0
    %575 = vmatpush2.msra.mxu0 0.0
    %576 = vmatprep.subr.mxu0 0.0
    %577 = vmatpush2.msra.mxu0 0.0
    %578 = vmatprep.subr.mxu0 0.0
    %579 = vmatpush2.msra.mxu0 0.0
    %580 = vmatprep.subr.mxu0 0.0
    %581 = vmatpush2.msra.mxu0 0.0
    %582 = vmatprep.subr.mxu0 0.0
    %583 = vmatpush2.msra.mxu0 0.0
    %584 = vmatprep.subr.mxu0 0.0
    %585 = vmatpush2.msra.mxu0 0.0
    %586 = vmatprep.subr.mxu0 0.0
    %587 = vmatpush2.msra.mxu0 0.0
    %588 = vmatprep.subr.mxu0 0.0
    %589 = vmatpush2.msra.mxu0 0.0
    %590 = vmatprep.subr.mxu0 0.0
    %591 = vmatpush2.msra.mxu0 0.0
    %592 = vmatprep.subr.mxu0 0.0
    %593 = vmatpush2.msra.mxu0 0.0
    %594 = vmatprep.subr.mxu0 0.0
    %595 = vmatpush2.msra.mxu0 0.0
    %596 = vmatprep.subr.mxu0 0.0
    %597 = vmatpush2.msra.mxu0 0.0
    %598 = vmatprep.subr.mxu0 0.0
    %599 = vmatpush2.msra.mxu0 0.0
    %600 = vmatprep.mubr.f32.mxu0 0.0
    %601 = vmatmul.mubr.f32.gmra.mxu0 %v534
    %v602 = vpop.f32.mrf.mxu0
    %v603 = vadd.f32 0.0, %v602
    %v604 = vpop.f32.mrf.mxu0
    %605 = vdwg.mxu0
    %v606 = vld [vmem:[#allocation7] sm:$0xff]
    %v607 = vld [vmem:[#allocation7 + $0x8] sm:$0xff]
    %v608 = vld [vmem:[#allocation7 + $0x10] sm:$0xff]
    %v609 = vld [vmem:[#allocation7 + $0x18] sm:$0xff]
    %610 = vmatprep.subr.mxu0 0.0
    %611 = vmatpush1.msra.mxu0 0.0
    %612 = vmatprep.subr.mxu0 0.0
    %613 = vmatpush1.msra.mxu0 0.0
    %614 = vmatprep.subr.mxu0 0.0
    %615 = vmatpush1.msra.mxu0 0.0
    %616 = vmatprep.subr.mxu0 0.0
    %617 = vmatpush1.msra.mxu0 0.0
    %618 = vmatprep.subr.mxu0 0.0
    %619 = vmatpush1.msra.mxu0 0.0
    %620 = vmatprep.subr.mxu0 0.0
    %621 = vmatpush1.msra.mxu0 0.0
    %622 = vmatprep.subr.mxu0 0.0
    %623 = vmatpush1.msra.mxu0 0.0
    %624 = vmatprep.subr.mxu0 0.0
    %625 = vmatpush1.msra.mxu0 0.0
    %626 = vmatprep.subr.mxu0 0.0
    %627 = vmatpush1.msra.mxu0 0.0
    %628 = vmatprep.subr.mxu0 0.0
    %629 = vmatpush1.msra.mxu0 0.0
    %630 = vmatprep.subr.mxu0 0.0
    %631 = vmatpush1.msra.mxu0 0.0
    %632 = vmatprep.subr.mxu0 0.0
    %633 = vmatpush1.msra.mxu0 0.0
    %634 = vmatprep.subr.mxu0 0.0
    %635 = vmatpush1.msra.mxu0 %v609
    %636 = vmatprep.subr.mxu0 0.0
    %637 = vmatpush1.msra.mxu0 %v608
    %638 = vmatprep.subr.mxu0 0.0
    %639 = vmatpush1.msra.mxu0 %v607
    %640 = vmatprep.subr.mxu0 0.0
    %641 = vmatpush1.msra.mxu0 %v606
    %642 = vmatprep.subr.mxu0 0.0
    %643 = vmatpush2.msra.mxu0 0.0
    %644 = vmatprep.subr.mxu0 0.0
    %645 = vmatpush2.msra.mxu0 0.0
    %646 = vmatprep.subr.mxu0 0.0
    %647 = vmatpush2.msra.mxu0 0.0
    %648 = vmatprep.subr.mxu0 0.0
    %649 = vmatpush2.msra.mxu0 0.0
    %650 = vmatprep.subr.mxu0 0.0
    %651 = vmatpush2.msra.mxu0 0.0
    %652 = vmatprep.subr.mxu0 0.0
    %653 = vmatpush2.msra.mxu0 0.0
    %654 = vmatprep.subr.mxu0 0.0
    %655 = vmatpush2.msra.mxu0 0.0
    %656 = vmatprep.subr.mxu0 0.0
    %657 = vmatpush2.msra.mxu0 0.0
    %658 = vmatprep.subr.mxu0 0.0
    %659 = vmatpush2.msra.mxu0 0.0
    %660 = vmatprep.subr.mxu0 0.0
    %661 = vmatpush2.msra.mxu0 0.0
    %662 = vmatprep.subr.mxu0 0.0
    %663 = vmatpush2.msra.mxu0 0.0
    %664 = vmatprep.subr.mxu0 0.0
    %665 = vmatpush2.msra.mxu0 0.0
    %666 = vmatprep.subr.mxu0 0.0
    %667 = vmatpush2.msra.mxu0 0.0
    %668 = vmatprep.subr.mxu0 0.0
    %669 = vmatpush2.msra.mxu0 0.0
    %670 = vmatprep.subr.mxu0 0.0
    %671 = vmatpush2.msra.mxu0 0.0
    %672 = vmatprep.subr.mxu0 0.0
    %673 = vmatpush2.msra.mxu0 0.0
    %674 = vmatprep.mubr.f32.mxu0 0.0
    %675 = vmatmul.mubr.f32.gmra.mxu0 %v534
    %v676 = vpop.f32.mrf.mxu0
    %v677 = vadd.f32 0.0, %v676
    %v678 = vpop.f32.mrf.mxu0
    %679 = vdwg.mxu0
    %v680 = vld [vmem:[#allocation9] sm:$0xff]
    %v681 = vld [vmem:[#allocation9 + $0x8] sm:$0xff]
    %v682 = vld [vmem:[#allocation9 + $0x10] sm:$0xff]
    %v683 = vld [vmem:[#allocation9 + $0x18] sm:$0xff]
    %684 = vmatprep.subr.mxu0 0.0
    %685 = vmatpush1.msra.mxu0 0.0
    %686 = vmatprep.subr.mxu0 0.0
    %687 = vmatpush1.msra.mxu0 0.0
    %688 = vmatprep.subr.mxu0 0.0
    %689 = vmatpush1.msra.mxu0 0.0
    %690 = vmatprep.subr.mxu0 0.0
    %691 = vmatpush1.msra.mxu0 0.0
    %692 = vmatprep.subr.mxu0 0.0
    %693 = vmatpush1.msra.mxu0 0.0
    %694 = vmatprep.subr.mxu0 0.0
    %695 = vmatpush1.msra.mxu0 0.0
    %696 = vmatprep.subr.mxu0 0.0
    %697 = vmatpush1.msra.mxu0 0.0
    %698 = vmatprep.subr.mxu0 0.0
    %699 = vmatpush1.msra.mxu0 0.0
    %700 = vmatprep.subr.mxu0 0.0
    %701 = vmatpush1.msra.mxu0 0.0
    %702 = vmatprep.subr.mxu0 0.0
    %703 = vmatpush1.msra.mxu0 0.0
    %704 = vmatprep.subr.mxu0 0.0
    %705 = vmatpush1.msra.mxu0 0.0
    %706 = vmatprep.subr.mxu0 0.0
    %707 = vmatpush1.msra.mxu0 0.0
    %708 = vmatprep.subr.mxu0 0.0
    %709 = vmatpush1.msra.mxu0 %v683
    %710 = vmatprep.subr.mxu0 0.0
    %711 = vmatpush1.msra.mxu0 %v682
    %712 = vmatprep.subr.mxu0 0.0
    %713 = vmatpush1.msra.mxu0 %v681
    %714 = vmatprep.subr.mxu0 0.0
    %715 = vmatpush1.msra.mxu0 %v680
    %716 = vmatprep.subr.mxu0 0.0
    %717 = vmatpush2.msra.mxu0 0.0
    %718 = vmatprep.subr.mxu0 0.0
    %719 = vmatpush2.msra.mxu0 0.0
    %720 = vmatprep.subr.mxu0 0.0
    %721 = vmatpush2.msra.mxu0 0.0
    %722 = vmatprep.subr.mxu0 0.0
    %723 = vmatpush2.msra.mxu0 0.0
    %724 = vmatprep.subr.mxu0 0.0
    %725 = vmatpush2.msra.mxu0 0.0
    %726 = vmatprep.subr.mxu0 0.0
    %727 = vmatpush2.msra.mxu0 0.0
    %728 = vmatprep.subr.mxu0 0.0
    %729 = vmatpush2.msra.mxu0 0.0
    %730 = vmatprep.subr.mxu0 0.0
    %731 = vmatpush2.msra.mxu0 0.0
    %732 = vmatprep.subr.mxu0 0.0
    %733 = vmatpush2.msra.mxu0 0.0
    %734 = vmatprep.subr.mxu0 0.0
    %735 = vmatpush2.msra.mxu0 0.0
    %736 = vmatprep.subr.mxu0 0.0
    %737 = vmatpush2.msra.mxu0 0.0
    %738 = vmatprep.subr.mxu0 0.0
    %739 = vmatpush2.msra.mxu0 0.0
    %740 = vmatprep.subr.mxu0 0.0
    %741 = vmatpush2.msra.mxu0 0.0
    %742 = vmatprep.subr.mxu0 0.0
    %743 = vmatpush2.msra.mxu0 0.0
    %744 = vmatprep.subr.mxu0 0.0
    %745 = vmatpush2.msra.mxu0 0.0
    %746 = vmatprep.subr.mxu0 0.0
    %747 = vmatpush2.msra.mxu0 0.0
    %748 = vmatprep.mubr.f32.mxu0 0.0
    %749 = vmatmul.mubr.f32.gmra.mxu0 %v534
    %v750 = vpop.f32.mrf.mxu0
    %v751 = vadd.f32 0.0, %v750
    %v752 = vpop.f32.mrf.mxu0
    %753 = vdwg.mxu0
    %v754 = vld [vmem:[#allocation10] sm:$0xff]
    %v755 = vld [vmem:[#allocation10 + $0x8] sm:$0xff]
    %vm756 = vcmask 130048
    %v758 = vsel %vm756, %v751, 0
    %760 = vmatprep.subr.mxu0 0.0
    %761 = vmatpush1.msra.mxu0 0.0
    %762 = vmatprep.subr.mxu0 0.0
    %763 = vmatpush1.msra.mxu0 0.0
    %764 = vmatprep.subr.mxu0 0.0
    %765 = vmatpush1.msra.mxu0 0.0
    %766 = vmatprep.subr.mxu0 0.0
    %767 = vmatpush1.msra.mxu0 0.0
    %768 = vmatprep.subr.mxu0 0.0
    %769 = vmatpush1.msra.mxu0 0.0
    %770 = vmatprep.subr.mxu0 0.0
    %771 = vmatpush1.msra.mxu0 0.0
    %772 = vmatprep.subr.mxu0 0.0
    %773 = vmatpush1.msra.mxu0 0.0
    %774 = vmatprep.subr.mxu0 0.0
    %775 = vmatpush1.msra.mxu0 0.0
    %776 = vmatprep.subr.mxu0 0.0
    %777 = vmatpush1.msra.mxu0 0.0
    %778 = vmatprep.subr.mxu0 0.0
    %779 = vmatpush1.msra.mxu0 0.0
    %780 = vmatprep.subr.mxu0 0.0
    %781 = vmatpush1.msra.mxu0 0.0
    %782 = vmatprep.subr.mxu0 0.0
    %783 = vmatpush1.msra.mxu0 0.0
    %784 = vmatprep.subr.mxu0 0.0
    %785 = vmatpush1.msra.mxu0 0.0
    %786 = vmatprep.subr.mxu0 0.0
    %787 = vmatpush1.msra.mxu0 0.0
    %788 = vmatprep.subr.mxu0 0.0
    %789 = vmatpush1.msra.mxu0 %v755
    %790 = vmatprep.subr.mxu0 0.0
    %791 = vmatpush1.msra.mxu0 %v754
    %792 = vmatprep.subr.mxu0 0.0
    %793 = vmatpush2.msra.mxu0 0.0
    %794 = vmatprep.subr.mxu0 0.0
    %795 = vmatpush2.msra.mxu0 0.0
    %796 = vmatprep.subr.mxu0 0.0
    %797 = vmatpush2.msra.mxu0 0.0
    %798 = vmatprep.subr.mxu0 0.0
    %799 = vmatpush2.msra.mxu0 0.0
    %800 = vmatprep.subr.mxu0 0.0
    %801 = vmatpush2.msra.mxu0 0.0
    %802 = vmatprep.subr.mxu0 0.0
    %803 = vmatpush2.msra.mxu0 0.0
    %804 = vmatprep.subr.mxu0 0.0
    %805 = vmatpush2.msra.mxu0 0.0
    %806 = vmatprep.subr.mxu0 0.0
    %807 = vmatpush2.msra.mxu0 0.0
    %808 = vmatprep.subr.mxu0 0.0
    %809 = vmatpush2.msra.mxu0 0.0
    %810 = vmatprep.subr.mxu0 0.0
    %811 = vmatpush2.msra.mxu0 0.0
    %812 = vmatprep.subr.mxu0 0.0
    %813 = vmatpush2.msra.mxu0 0.0
    %814 = vmatprep.subr.mxu0 0.0
    %815 = vmatpush2.msra.mxu0 0.0
    %816 = vmatprep.subr.mxu0 0.0
    %817 = vmatpush2.msra.mxu0 0.0
    %818 = vmatprep.subr.mxu0 0.0
    %819 = vmatpush2.msra.mxu0 0.0
    %820 = vmatprep.subr.mxu0 0.0
    %821 = vmatpush2.msra.mxu0 0.0
    %822 = vmatprep.subr.mxu0 0.0
    %823 = vmatpush2.msra.mxu0 0.0
    %824 = vmatprep.mubr.f32.mxu0 0.0
    %825 = vmatmul.mubr.f32.gmra.mxu0 %v758
    %v826 = vpop.f32.mrf.mxu0
    %v827 = vadd.f32 0.0, %v826
    %v828 = vpop.f32.mrf.mxu0
    %829 = vdwg.mxu0
    %v830 = vld [vmem:[#allocation12] sm:$0xff]
    %v831 = vld [vmem:[#allocation12 + $0x8] sm:$0xff]
    %832 = vmatprep.subr.mxu0 0.0
    %833 = vmatpush1.msra.mxu0 0.0
    %834 = vmatprep.subr.mxu0 0.0
    %835 = vmatpush1.msra.mxu0 0.0
    %836 = vmatprep.subr.mxu0 0.0
    %837 = vmatpush1.msra.mxu0 0.0
    %838 = vmatprep.subr.mxu0 0.0
    %839 = vmatpush1.msra.mxu0 0.0
    %840 = vmatprep.subr.mxu0 0.0
    %841 = vmatpush1.msra.mxu0 0.0
    %842 = vmatprep.subr.mxu0 0.0
    %843 = vmatpush1.msra.mxu0 0.0
    %844 = vmatprep.subr.mxu0 0.0
    %845 = vmatpush1.msra.mxu0 0.0
    %846 = vmatprep.subr.mxu0 0.0
    %847 = vmatpush1.msra.mxu0 0.0
    %848 = vmatprep.subr.mxu0 0.0
    %849 = vmatpush1.msra.mxu0 0.0
    %850 = vmatprep.subr.mxu0 0.0
    %851 = vmatpush1.msra.mxu0 0.0
    %852 = vmatprep.subr.mxu0 0.0
    %853 = vmatpush1.msra.mxu0 0.0
    %854 = vmatprep.subr.mxu0 0.0
    %855 = vmatpush1.msra.mxu0 0.0
    %856 = vmatprep.subr.mxu0 0.0
    %857 = vmatpush1.msra.mxu0 0.0
    %858 = vmatprep.subr.mxu0 0.0
    %859 = vmatpush1.msra.mxu0 0.0
    %860 = vmatprep.subr.mxu0 0.0
    %861 = vmatpush1.msra.mxu0 %v831
    %862 = vmatprep.subr.mxu0 0.0
    %863 = vmatpush1.msra.mxu0 %v830
    %864 = vmatprep.subr.mxu0 0.0
    %865 = vmatpush2.msra.mxu0 0.0
    %866 = vmatprep.subr.mxu0 0.0
    %867 = vmatpush2.msra.mxu0 0.0
    %868 = vmatprep.subr.mxu0 0.0
    %869 = vmatpush2.msra.mxu0 0.0
    %870 = vmatprep.subr.mxu0 0.0
    %871 = vmatpush2.msra.mxu0 0.0
    %872 = vmatprep.subr.mxu0 0.0
    %873 = vmatpush2.msra.mxu0 0.0
    %874 = vmatprep.subr.mxu0 0.0
    %875 = vmatpush2.msra.mxu0 0.0
    %876 = vmatprep.subr.mxu0 0.0
    %877 = vmatpush2.msra.mxu0 0.0
    %878 = vmatprep.subr.mxu0 0.0
    %879 = vmatpush2.msra.mxu0 0.0
    %880 = vmatprep.subr.mxu0 0.0
    %881 = vmatpush2.msra.mxu0 0.0
    %882 = vmatprep.subr.mxu0 0.0
    %883 = vmatpush2.msra.mxu0 0.0
    %884 = vmatprep.subr.mxu0 0.0
    %885 = vmatpush2.msra.mxu0 0.0
    %886 = vmatprep.subr.mxu0 0.0
    %887 = vmatpush2.msra.mxu0 0.0
    %888 = vmatprep.subr.mxu0 0.0
    %889 = vmatpush2.msra.mxu0 0.0
    %890 = vmatprep.subr.mxu0 0.0
    %891 = vmatpush2.msra.mxu0 0.0
    %892 = vmatprep.subr.mxu0 0.0
    %893 = vmatpush2.msra.mxu0 0.0
    %894 = vmatprep.subr.mxu0 0.0
    %895 = vmatpush2.msra.mxu0 0.0
    %896 = vmatprep.mubr.f32.mxu0 0.0
    %897 = vmatmul.mubr.f32.gmra.mxu0 %v758
    %v898 = vpop.f32.mrf.mxu0
    %v899 = vadd.f32 0.0, %v898
    %v900 = vpop.f32.mrf.mxu0
    %901 = vdwg.mxu0
    %v902 = vld [vmem:[#allocation13] sm:$0xff]
    %v903 = vld [vmem:[#allocation13 + $0x8] sm:$0xff]
    %904 = vmatprep.subr.mxu0 0.0
    %905 = vmatpush1.msra.mxu0 0.0
    %906 = vmatprep.subr.mxu0 0.0
    %907 = vmatpush1.msra.mxu0 0.0
    %908 = vmatprep.subr.mxu0 0.0
    %909 = vmatpush1.msra.mxu0 0.0
    %910 = vmatprep.subr.mxu0 0.0
    %911 = vmatpush1.msra.mxu0 0.0
    %912 = vmatprep.subr.mxu0 0.0
    %913 = vmatpush1.msra.mxu0 0.0
    %914 = vmatprep.subr.mxu0 0.0
    %915 = vmatpush1.msra.mxu0 0.0
    %916 = vmatprep.subr.mxu0 0.0
    %917 = vmatpush1.msra.mxu0 0.0
    %918 = vmatprep.subr.mxu0 0.0
    %919 = vmatpush1.msra.mxu0 0.0
    %920 = vmatprep.subr.mxu0 0.0
    %921 = vmatpush1.msra.mxu0 0.0
    %922 = vmatprep.subr.mxu0 0.0
    %923 = vmatpush1.msra.mxu0 0.0
    %924 = vmatprep.subr.mxu0 0.0
    %925 = vmatpush1.msra.mxu0 0.0
    %926 = vmatprep.subr.mxu0 0.0
    %927 = vmatpush1.msra.mxu0 0.0
    %928 = vmatprep.subr.mxu0 0.0
    %929 = vmatpush1.msra.mxu0 0.0
    %930 = vmatprep.subr.mxu0 0.0
    %931 = vmatpush1.msra.mxu0 0.0
    %932 = vmatprep.subr.mxu0 0.0
    %933 = vmatpush1.msra.mxu0 %v903
    %934 = vmatprep.subr.mxu0 0.0
    %935 = vmatpush1.msra.mxu0 %v902
    %936 = vmatprep.subr.mxu0 0.0
    %937 = vmatpush2.msra.mxu0 0.0
    %938 = vmatprep.subr.mxu0 0.0
    %939 = vmatpush2.msra.mxu0 0.0
    %940 = vmatprep.subr.mxu0 0.0
    %941 = vmatpush2.msra.mxu0 0.0
    %942 = vmatprep.subr.mxu0 0.0
    %943 = vmatpush2.msra.mxu0 0.0
    %944 = vmatprep.subr.mxu0 0.0
    %945 = vmatpush2.msra.mxu0 0.0
    %946 = vmatprep.subr.mxu0 0.0
    %947 = vmatpush2.msra.mxu0 0.0
    %948 = vmatprep.subr.mxu0 0.0
    %949 = vmatpush2.msra.mxu0 0.0
    %950 = vmatprep.subr.mxu0 0.0
    %951 = vmatpush2.msra.mxu0 0.0
    %952 = vmatprep.subr.mxu0 0.0
    %953 = vmatpush2.msra.mxu0 0.0
    %954 = vmatprep.subr.mxu0 0.0
    %955 = vmatpush2.msra.mxu0 0.0
    %956 = vmatprep.subr.mxu0 0.0
    %957 = vmatpush2.msra.mxu0 0.0
    %958 = vmatprep.subr.mxu0 0.0
    %959 = vmatpush2.msra.mxu0 0.0
    %960 = vmatprep.subr.mxu0 0.0
    %961 = vmatpush2.msra.mxu0 0.0
    %962 = vmatprep.subr.mxu0 0.0
    %963 = vmatpush2.msra.mxu0 0.0
    %964 = vmatprep.subr.mxu0 0.0
    %965 = vmatpush2.msra.mxu0 0.0
    %966 = vmatprep.subr.mxu0 0.0
    %967 = vmatpush2.msra.mxu0 0.0
    %968 = vmatprep.mubr.f32.mxu0 0.0
    %969 = vmatmul.mubr.f32.gmra.mxu0 %v758
    %v970 = vpop.f32.mrf.mxu0
    %v971 = vadd.f32 0.0, %v970
    %v972 = vpop.f32.mrf.mxu0
    %973 = vdwg.mxu0
    %v974 = vld [vmem:[#allocation15] sm:$0xff]
    %vm975 = vcmask 64512
    %v977 = vsel %vm975, %v971, 0
    %979 = vmatprep.subr.mxu0 0.0
    %980 = vmatpush1.msra.mxu0 0.0
    %981 = vmatprep.subr.mxu0 0.0
    %982 = vmatpush1.msra.mxu0 0.0
    %983 = vmatprep.subr.mxu0 0.0
    %984 = vmatpush1.msra.mxu0 0.0
    %985 = vmatprep.subr.mxu0 0.0
    %986 = vmatpush1.msra.mxu0 0.0
    %987 = vmatprep.subr.mxu0 0.0
    %988 = vmatpush1.msra.mxu0 0.0
    %989 = vmatprep.subr.mxu0 0.0
    %990 = vmatpush1.msra.mxu0 0.0
    %991 = vmatprep.subr.mxu0 0.0
    %992 = vmatpush1.msra.mxu0 0.0
    %993 = vmatprep.subr.mxu0 0.0
    %994 = vmatpush1.msra.mxu0 0.0
    %995 = vmatprep.subr.mxu0 0.0
    %996 = vmatpush1.msra.mxu0 0.0
    %997 = vmatprep.subr.mxu0 0.0
    %998 = vmatpush1.msra.mxu0 0.0
    %999 = vmatprep.subr.mxu0 0.0
    %1000 = vmatpush1.msra.mxu0 0.0
    %1001 = vmatprep.subr.mxu0 0.0
    %1002 = vmatpush1.msra.mxu0 0.0
    %1003 = vmatprep.subr.mxu0 0.0
    %1004 = vmatpush1.msra.mxu0 0.0
    %1005 = vmatprep.subr.mxu0 0.0
    %1006 = vmatpush1.msra.mxu0 0.0
    %1007 = vmatprep.subr.mxu0 0.0
    %1008 = vmatpush1.msra.mxu0 0.0
    %1009 = vmatprep.subr.mxu0 0.0
    %1010 = vmatpush1.msra.mxu0 %v974
    %1011 = vmatprep.subr.mxu0 0.0
    %1012 = vmatpush2.msra.mxu0 0.0
    %1013 = vmatprep.subr.mxu0 0.0
    %1014 = vmatpush2.msra.mxu0 0.0
    %1015 = vmatprep.subr.mxu0 0.0
    %1016 = vmatpush2.msra.mxu0 0.0
    %1017 = vmatprep.subr.mxu0 0.0
    %1018 = vmatpush2.msra.mxu0 0.0
    %1019 = vmatprep.subr.mxu0 0.0
    %1020 = vmatpush2.msra.mxu0 0.0
    %1021 = vmatprep.subr.mxu0 0.0
    %1022 = vmatpush2.msra.mxu0 0.0
    %1023 = vmatprep.subr.mxu0 0.0
    %1024 = vmatpush2.msra.mxu0 0.0
    %1025 = vmatprep.subr.mxu0 0.0
    %1026 = vmatpush2.msra.mxu0 0.0
    %1027 = vmatprep.subr.mxu0 0.0
    %1028 = vmatpush2.msra.mxu0 0.0
    %1029 = vmatprep.subr.mxu0 0.0
    %1030 = vmatpush2.msra.mxu0 0.0
    %1031 = vmatprep.subr.mxu0 0.0
    %1032 = vmatpush2.msra.mxu0 0.0
    %1033 = vmatprep.subr.mxu0 0.0
    %1034 = vmatpush2.msra.mxu0 0.0
    %1035 = vmatprep.subr.mxu0 0.0
    %1036 = vmatpush2.msra.mxu0 0.0
    %1037 = vmatprep.subr.mxu0 0.0
    %1038 = vmatpush2.msra.mxu0 0.0
    %1039 = vmatprep.subr.mxu0 0.0
    %1040 = vmatpush2.msra.mxu0 0.0
    %1041 = vmatprep.subr.mxu0 0.0
    %1042 = vmatpush2.msra.mxu0 0.0
    %1043 = vmatprep.mubr.f32.mxu0 0.0
    %1044 = vmatmul.mubr.f32.gmra.mxu0 %v977
    %v1045 = vpop.f32.mrf.mxu0
    %v1046 = vadd.f32 0.0, %v1045
    %v1047 = vpop.f32.mrf.mxu0
    %1048 = vdwg.mxu0
    %v1049 = vld [vmem:[#allocation16] sm:$0xff]
    %1050 = vmatprep.subr.mxu0 0.0
    %1051 = vmatpush1.msra.mxu0 0.0
    %1052 = vmatprep.subr.mxu0 0.0
    %1053 = vmatpush1.msra.mxu0 0.0
    %1054 = vmatprep.subr.mxu0 0.0
    %1055 = vmatpush1.msra.mxu0 0.0
    %1056 = vmatprep.subr.mxu0 0.0
    %1057 = vmatpush1.msra.mxu0 0.0
    %1058 = vmatprep.subr.mxu0 0.0
    %1059 = vmatpush1.msra.mxu0 0.0
    %1060 = vmatprep.subr.mxu0 0.0
    %1061 = vmatpush1.msra.mxu0 0.0
    %1062 = vmatprep.subr.mxu0 0.0
    %1063 = vmatpush1.msra.mxu0 0.0
    %1064 = vmatprep.subr.mxu0 0.0
    %1065 = vmatpush1.msra.mxu0 0.0
    %1066 = vmatprep.subr.mxu0 0.0
    %1067 = vmatpush1.msra.mxu0 0.0
    %1068 = vmatprep.subr.mxu0 0.0
    %1069 = vmatpush1.msra.mxu0 0.0
    %1070 = vmatprep.subr.mxu0 0.0
    %1071 = vmatpush1.msra.mxu0 0.0
    %1072 = vmatprep.subr.mxu0 0.0
    %1073 = vmatpush1.msra.mxu0 0.0
    %1074 = vmatprep.subr.mxu0 0.0
    %1075 = vmatpush1.msra.mxu0 0.0
    %1076 = vmatprep.subr.mxu0 0.0
    %1077 = vmatpush1.msra.mxu0 0.0
    %1078 = vmatprep.subr.mxu0 0.0
    %1079 = vmatpush1.msra.mxu0 0.0
    %1080 = vmatprep.subr.mxu0 0.0
    %1081 = vmatpush1.msra.mxu0 %v1049
    %1082 = vmatprep.subr.mxu0 0.0
    %1083 = vmatpush2.msra.mxu0 0.0
    %1084 = vmatprep.subr.mxu0 0.0
    %1085 = vmatpush2.msra.mxu0 0.0
    %1086 = vmatprep.subr.mxu0 0.0
    %1087 = vmatpush2.msra.mxu0 0.0
    %1088 = vmatprep.subr.mxu0 0.0
    %1089 = vmatpush2.msra.mxu0 0.0
    %1090 = vmatprep.subr.mxu0 0.0
    %1091 = vmatpush2.msra.mxu0 0.0
    %1092 = vmatprep.subr.mxu0 0.0
    %1093 = vmatpush2.msra.mxu0 0.0
    %1094 = vmatprep.subr.mxu0 0.0
    %1095 = vmatpush2.msra.mxu0 0.0
    %1096 = vmatprep.subr.mxu0 0.0
    %1097 = vmatpush2.msra.mxu0 0.0
    %1098 = vmatprep.subr.mxu0 0.0
    %1099 = vmatpush2.msra.mxu0 0.0
    %1100 = vmatprep.subr.mxu0 0.0
    %1101 = vmatpush2.msra.mxu0 0.0
    %1102 = vmatprep.subr.mxu0 0.0
    %1103 = vmatpush2.msra.mxu0 0.0
    %1104 = vmatprep.subr.mxu0 0.0
    %1105 = vmatpush2.msra.mxu0 0.0
    %1106 = vmatprep.subr.mxu0 0.0
    %1107 = vmatpush2.msra.mxu0 0.0
    %1108 = vmatprep.subr.mxu0 0.0
    %1109 = vmatpush2.msra.mxu0 0.0
    %1110 = vmatprep.subr.mxu0 0.0
    %1111 = vmatpush2.msra.mxu0 0.0
    %1112 = vmatprep.subr.mxu0 0.0
    %1113 = vmatpush2.msra.mxu0 0.0
    %1114 = vmatprep.mubr.f32.mxu0 0.0
    %1115 = vmatmul.mubr.f32.gmra.mxu0 %v977
    %v1116 = vpop.f32.mrf.mxu0
    %v1117 = vadd.f32 0.0, %v1116
    %v1118 = vpop.f32.mrf.mxu0
    %1119 = vdwg.mxu0
    %v1120 = vld [vmem:[#allocation18] sm:$0xff]
    %v1121 = vld [vmem:[#allocation19] sm:$0x1]
    %v1123 = vlaneseq
    %v1124 = vshrl.u32 %v1123, 7
    %v1125 = vsub.s32 0, %v1124
    %v1126 = vrot.slane %v1121, %v1125
    %1128 = vmatprep.subr.mxu0 0.0
    %1129 = vmatpush1.msra.mxu0 0.0
    %1130 = vmatprep.subr.mxu0 0.0
    %1131 = vmatpush1.msra.mxu0 0.0
    %1132 = vmatprep.subr.mxu0 0.0
    %1133 = vmatpush1.msra.mxu0 0.0
    %1134 = vmatprep.subr.mxu0 0.0
    %1135 = vmatpush1.msra.mxu0 0.0
    %1136 = vmatprep.subr.mxu0 0.0
    %1137 = vmatpush1.msra.mxu0 0.0
    %1138 = vmatprep.subr.mxu0 0.0
    %1139 = vmatpush1.msra.mxu0 0.0
    %1140 = vmatprep.subr.mxu0 0.0
    %1141 = vmatpush1.msra.mxu0 0.0
    %1142 = vmatprep.subr.mxu0 0.0
    %1143 = vmatpush1.msra.mxu0 0.0
    %1144 = vmatprep.subr.mxu0 0.0
    %1145 = vmatpush1.msra.mxu0 0.0
    %1146 = vmatprep.subr.mxu0 0.0
    %1147 = vmatpush1.msra.mxu0 0.0
    %1148 = vmatprep.subr.mxu0 0.0
    %1149 = vmatpush1.msra.mxu0 0.0
    %1150 = vmatprep.subr.mxu0 0.0
    %1151 = vmatpush1.msra.mxu0 0.0
    %1152 = vmatprep.subr.mxu0 0.0
    %1153 = vmatpush1.msra.mxu0 0.0
    %1154 = vmatprep.subr.mxu0 0.0
    %1155 = vmatpush1.msra.mxu0 0.0
    %1156 = vmatprep.subr.mxu0 0.0
    %1157 = vmatpush1.msra.mxu0 0.0
    %1158 = vmatprep.subr.mxu0 0.0
    %1159 = vmatpush1.msra.mxu0 %v1120
    %1160 = vmatprep.subr.mxu0 0.0
    %1161 = vmatpush2.msra.mxu0 0.0
    %1162 = vmatprep.subr.mxu0 0.0
    %1163 = vmatpush2.msra.mxu0 0.0
    %1164 = vmatprep.subr.mxu0 0.0
    %1165 = vmatpush2.msra.mxu0 0.0
    %1166 = vmatprep.subr.mxu0 0.0
    %1167 = vmatpush2.msra.mxu0 0.0
    %1168 = vmatprep.subr.mxu0 0.0
    %1169 = vmatpush2.msra.mxu0 0.0
    %1170 = vmatprep.subr.mxu0 0.0
    %1171 = vmatpush2.msra.mxu0 0.0
    %1172 = vmatprep.subr.mxu0 0.0
    %1173 = vmatpush2.msra.mxu0 0.0
    %1174 = vmatprep.subr.mxu0 0.0
    %1175 = vmatpush2.msra.mxu0 0.0
    %1176 = vmatprep.subr.mxu0 0.0
    %1177 = vmatpush2.msra.mxu0 0.0
    %1178 = vmatprep.subr.mxu0 0.0
    %1179 = vmatpush2.msra.mxu0 0.0
    %1180 = vmatprep.subr.mxu0 0.0
    %1181 = vmatpush2.msra.mxu0 0.0
    %1182 = vmatprep.subr.mxu0 0.0
    %1183 = vmatpush2.msra.mxu0 0.0
    %1184 = vmatprep.subr.mxu0 0.0
    %1185 = vmatpush2.msra.mxu0 0.0
    %1186 = vmatprep.subr.mxu0 0.0
    %1187 = vmatpush2.msra.mxu0 0.0
    %1188 = vmatprep.subr.mxu0 0.0
    %1189 = vmatpush2.msra.mxu0 0.0
    %1190 = vmatprep.subr.mxu0 0.0
    %1191 = vmatpush2.msra.mxu0 0.0
    %1192 = vmatprep.mubr.f32.mxu0 0.0
    %1193 = vmatmul.mubr.f32.gmra.mxu0 %v977
    %v1194 = vpop.f32.mrf.mxu0
    %v1195 = vadd.f32 %v1126, %v1194
    %v1196 = vpop.f32.mrf.mxu0
    %1197 = vdwg.mxu0
    %v1198 = vadd.f32 %v1195, %v1117
    %v1199 = vld [vmem:[#allocation27] sm:$0xf]
    %v1200 = vld [vmem:[%s21] sm:$0xf]
    %vm1201 = vcmask 31744
    %v1203 = vsel %vm1201, %v1046, 0
    %vm1205 = vcmask 1043456
    %v1207 = vsel %vm1205, %v1200, 0
    %1209 = vmatprep.subr.mxu0 0.0
    %1210 = vmatpush1.msra.mxu0 0.0
    %1211 = vmatprep.subr.mxu0 0.0
    %1212 = vmatpush1.msra.mxu0 0.0
    %1213 = vmatprep.subr.mxu0 0.0
    %1214 = vmatpush1.msra.mxu0 0.0
    %1215 = vmatprep.subr.mxu0 0.0
    %1216 = vmatpush1.msra.mxu0 0.0
    %1217 = vmatprep.subr.mxu0 0.0
    %1218 = vmatpush1.msra.mxu0 0.0
    %1219 = vmatprep.subr.mxu0 0.0
    %1220 = vmatpush1.msra.mxu0 0.0
    %1221 = vmatprep.subr.mxu0 0.0
    %1222 = vmatpush1.msra.mxu0 0.0
    %1223 = vmatprep.subr.mxu0 0.0
    %1224 = vmatpush1.msra.mxu0 0.0
    %1225 = vmatprep.subr.mxu0 0.0
    %1226 = vmatpush1.msra.mxu0 0.0
    %1227 = vmatprep.subr.mxu0 0.0
    %1228 = vmatpush1.msra.mxu0 0.0
    %1229 = vmatprep.subr.mxu0 0.0
    %1230 = vmatpush1.msra.mxu0 0.0
    %1231 = vmatprep.subr.mxu0 0.0
    %1232 = vmatpush1.msra.mxu0 0.0
    %1233 = vmatprep.subr.mxu0 0.0
    %1234 = vmatpush1.msra.mxu0 0.0
    %1235 = vmatprep.subr.mxu0 0.0
    %1236 = vmatpush1.msra.mxu0 0.0
    %1237 = vmatprep.subr.mxu0 0.0
    %1238 = vmatpush1.msra.mxu0 0.0
    %1239 = vmatprep.subr.mxu0 0.0
    %1240 = vmatpush1.msra.mxu0 %v1207
    %1241 = vmatprep.subr.mxu0 0.0
    %1242 = vmatpush2.msra.mxu0 0.0
    %1243 = vmatprep.subr.mxu0 0.0
    %1244 = vmatpush2.msra.mxu0 0.0
    %1245 = vmatprep.subr.mxu0 0.0
    %1246 = vmatpush2.msra.mxu0 0.0
    %1247 = vmatprep.subr.mxu0 0.0
    %1248 = vmatpush2.msra.mxu0 0.0
    %1249 = vmatprep.subr.mxu0 0.0
    %1250 = vmatpush2.msra.mxu0 0.0
    %1251 = vmatprep.subr.mxu0 0.0
    %1252 = vmatpush2.msra.mxu0 0.0
    %1253 = vmatprep.subr.mxu0 0.0
    %1254 = vmatpush2.msra.mxu0 0.0
    %1255 = vmatprep.subr.mxu0 0.0
    %1256 = vmatpush2.msra.mxu0 0.0
    %1257 = vmatprep.subr.mxu0 0.0
    %1258 = vmatpush2.msra.mxu0 0.0
    %1259 = vmatprep.subr.mxu0 0.0
    %1260 = vmatpush2.msra.mxu0 0.0
    %1261 = vmatprep.subr.mxu0 0.0
    %1262 = vmatpush2.msra.mxu0 0.0
    %1263 = vmatprep.subr.mxu0 0.0
    %1264 = vmatpush2.msra.mxu0 0.0
    %1265 = vmatprep.subr.mxu0 0.0
    %1266 = vmatpush2.msra.mxu0 0.0
    %1267 = vmatprep.subr.mxu0 0.0
    %1268 = vmatpush2.msra.mxu0 0.0
    %1269 = vmatprep.subr.mxu0 0.0
    %1270 = vmatpush2.msra.mxu0 0.0
    %1271 = vmatprep.subr.mxu0 0.0
    %1272 = vmatpush2.msra.mxu0 0.0
    %1273 = vmatprep.mubr.f32.mxu0 0.0
    %1274 = vmatmul.mubr.f32.gmra.mxu0 %v1203
    %v1275 = vpop.f32.mrf.mxu0
    %v1276 = vadd.f32 0.0, %v1275
    %v1277 = vpop.f32.mrf.mxu0
    %1278 = vdwg.mxu0
    %v1280 = vsel %vm1201, %v1198, 0
    %v1283 = vsel %vm1205, %v1199, 0
    %1285 = vmatprep.subr.mxu0 0.0
    %1286 = vmatpush1.msra.mxu0 0.0
    %1287 = vmatprep.subr.mxu0 0.0
    %1288 = vmatpush1.msra.mxu0 0.0
    %1289 = vmatprep.subr.mxu0 0.0
    %1290 = vmatpush1.msra.mxu0 0.0
    %1291 = vmatprep.subr.mxu0 0.0
    %1292 = vmatpush1.msra.mxu0 0.0
    %1293 = vmatprep.subr.mxu0 0.0
    %1294 = vmatpush1.msra.mxu0 0.0
    %1295 = vmatprep.subr.mxu0 0.0
    %1296 = vmatpush1.msra.mxu0 0.0
    %1297 = vmatprep.subr.mxu0 0.0
    %1298 = vmatpush1.msra.mxu0 0.0
    %1299 = vmatprep.subr.mxu0 0.0
    %1300 = vmatpush1.msra.mxu0 0.0
    %1301 = vmatprep.subr.mxu0 0.0
    %1302 = vmatpush1.msra.mxu0 0.0
    %1303 = vmatprep.subr.mxu0 0.0
    %1304 = vmatpush1.msra.mxu0 0.0
    %1305 = vmatprep.subr.mxu0 0.0
    %1306 = vmatpush1.msra.mxu0 0.0
    %1307 = vmatprep.subr.mxu0 0.0
    %1308 = vmatpush1.msra.mxu0 0.0
    %1309 = vmatprep.subr.mxu0 0.0
    %1310 = vmatpush1.msra.mxu0 0.0
    %1311 = vmatprep.subr.mxu0 0.0
    %1312 = vmatpush1.msra.mxu0 0.0
    %1313 = vmatprep.subr.mxu0 0.0
    %1314 = vmatpush1.msra.mxu0 0.0
    %1315 = vmatprep.subr.mxu0 0.0
    %1316 = vmatpush1.msra.mxu0 %v1283
    %1317 = vmatprep.subr.mxu0 0.0
    %1318 = vmatpush2.msra.mxu0 0.0
    %1319 = vmatprep.subr.mxu0 0.0
    %1320 = vmatpush2.msra.mxu0 0.0
    %1321 = vmatprep.subr.mxu0 0.0
    %1322 = vmatpush2.msra.mxu0 0.0
    %1323 = vmatprep.subr.mxu0 0.0
    %1324 = vmatpush2.msra.mxu0 0.0
    %1325 = vmatprep.subr.mxu0 0.0
    %1326 = vmatpush2.msra.mxu0 0.0
    %1327 = vmatprep.subr.mxu0 0.0
    %1328 = vmatpush2.msra.mxu0 0.0
    %1329 = vmatprep.subr.mxu0 0.0
    %1330 = vmatpush2.msra.mxu0 0.0
    %1331 = vmatprep.subr.mxu0 0.0
    %1332 = vmatpush2.msra.mxu0 0.0
    %1333 = vmatprep.subr.mxu0 0.0
    %1334 = vmatpush2.msra.mxu0 0.0
    %1335 = vmatprep.subr.mxu0 0.0
    %1336 = vmatpush2.msra.mxu0 0.0
    %1337 = vmatprep.subr.mxu0 0.0
    %1338 = vmatpush2.msra.mxu0 0.0
    %1339 = vmatprep.subr.mxu0 0.0
    %1340 = vmatpush2.msra.mxu0 0.0
    %1341 = vmatprep.subr.mxu0 0.0
    %1342 = vmatpush2.msra.mxu0 0.0
    %1343 = vmatprep.subr.mxu0 0.0
    %1344 = vmatpush2.msra.mxu0 0.0
    %1345 = vmatprep.subr.mxu0 0.0
    %1346 = vmatpush2.msra.mxu0 0.0
    %1347 = vmatprep.subr.mxu0 0.0
    %1348 = vmatpush2.msra.mxu0 0.0
    %1349 = vmatprep.mubr.f32.mxu0 0.0
    %1350 = vmatmul.mubr.f32.gmra.mxu0 %v1280
    %v1351 = vpop.f32.mrf.mxu0
    %v1352 = vadd.f32 %v1276, %v1351
    %v1353 = vpop.f32.mrf.mxu0
    %1354 = vdwg.mxu0
    %v1355 = vadd.f32 %v1352, %v899
    %v1356 = vld [vmem:[#allocation25] sm:$0xff]
    %v1357 = vld [vmem:[%s19] sm:$0xff]
    %v1359 = vsel %vm975, %v827, 0
    %1361 = vmatprep.subr.mxu0 0.0
    %1362 = vmatpush1.msra.mxu0 0.0
    %1363 = vmatprep.subr.mxu0 0.0
    %1364 = vmatpush1.msra.mxu0 0.0
    %1365 = vmatprep.subr.mxu0 0.0
    %1366 = vmatpush1.msra.mxu0 0.0
    %1367 = vmatprep.subr.mxu0 0.0
    %1368 = vmatpush1.msra.mxu0 0.0
    %1369 = vmatprep.subr.mxu0 0.0
    %1370 = vmatpush1.msra.mxu0 0.0
    %1371 = vmatprep.subr.mxu0 0.0
    %1372 = vmatpush1.msra.mxu0 0.0
    %1373 = vmatprep.subr.mxu0 0.0
    %1374 = vmatpush1.msra.mxu0 0.0
    %1375 = vmatprep.subr.mxu0 0.0
    %1376 = vmatpush1.msra.mxu0 0.0
    %1377 = vmatprep.subr.mxu0 0.0
    %1378 = vmatpush1.msra.mxu0 0.0
    %1379 = vmatprep.subr.mxu0 0.0
    %1380 = vmatpush1.msra.mxu0 0.0
    %1381 = vmatprep.subr.mxu0 0.0
    %1382 = vmatpush1.msra.mxu0 0.0
    %1383 = vmatprep.subr.mxu0 0.0
    %1384 = vmatpush1.msra.mxu0 0.0
    %1385 = vmatprep.subr.mxu0 0.0
    %1386 = vmatpush1.msra.mxu0 0.0
    %1387 = vmatprep.subr.mxu0 0.0
    %1388 = vmatpush1.msra.mxu0 0.0
    %1389 = vmatprep.subr.mxu0 0.0
    %1390 = vmatpush1.msra.mxu0 0.0
    %1391 = vmatprep.subr.mxu0 0.0
    %1392 = vmatpush1.msra.mxu0 %v1357
    %1393 = vmatprep.subr.mxu0 0.0
    %1394 = vmatpush2.msra.mxu0 0.0
    %1395 = vmatprep.subr.mxu0 0.0
    %1396 = vmatpush2.msra.mxu0 0.0
    %1397 = vmatprep.subr.mxu0 0.0
    %1398 = vmatpush2.msra.mxu0 0.0
    %1399 = vmatprep.subr.mxu0 0.0
    %1400 = vmatpush2.msra.mxu0 0.0
    %1401 = vmatprep.subr.mxu0 0.0
    %1402 = vmatpush2.msra.mxu0 0.0
    %1403 = vmatprep.subr.mxu0 0.0
    %1404 = vmatpush2.msra.mxu0 0.0
    %1405 = vmatprep.subr.mxu0 0.0
    %1406 = vmatpush2.msra.mxu0 0.0
    %1407 = vmatprep.subr.mxu0 0.0
    %1408 = vmatpush2.msra.mxu0 0.0
    %1409 = vmatprep.subr.mxu0 0.0
    %1410 = vmatpush2.msra.mxu0 0.0
    %1411 = vmatprep.subr.mxu0 0.0
    %1412 = vmatpush2.msra.mxu0 0.0
    %1413 = vmatprep.subr.mxu0 0.0
    %1414 = vmatpush2.msra.mxu0 0.0
    %1415 = vmatprep.subr.mxu0 0.0
    %1416 = vmatpush2.msra.mxu0 0.0
    %1417 = vmatprep.subr.mxu0 0.0
    %1418 = vmatpush2.msra.mxu0 0.0
    %1419 = vmatprep.subr.mxu0 0.0
    %1420 = vmatpush2.msra.mxu0 0.0
    %1421 = vmatprep.subr.mxu0 0.0
    %1422 = vmatpush2.msra.mxu0 0.0
    %1423 = vmatprep.subr.mxu0 0.0
    %1424 = vmatpush2.msra.mxu0 0.0
    %1425 = vmatprep.mubr.f32.mxu0 0.0
    %1426 = vmatmul.mubr.f32.gmra.mxu0 %v1359
    %v1427 = vpop.f32.mrf.mxu0
    %v1428 = vadd.f32 0.0, %v1427
    %v1429 = vpop.f32.mrf.mxu0
    %1430 = vdwg.mxu0
    %v1432 = vsel %vm975, %v1355, 0
    %1434 = vmatprep.subr.mxu0 0.0
    %1435 = vmatpush1.msra.mxu0 0.0
    %1436 = vmatprep.subr.mxu0 0.0
    %1437 = vmatpush1.msra.mxu0 0.0
    %1438 = vmatprep.subr.mxu0 0.0
    %1439 = vmatpush1.msra.mxu0 0.0
    %1440 = vmatprep.subr.mxu0 0.0
    %1441 = vmatpush1.msra.mxu0 0.0
    %1442 = vmatprep.subr.mxu0 0.0
    %1443 = vmatpush1.msra.mxu0 0.0
    %1444 = vmatprep.subr.mxu0 0.0
    %1445 = vmatpush1.msra.mxu0 0.0
    %1446 = vmatprep.subr.mxu0 0.0
    %1447 = vmatpush1.msra.mxu0 0.0
    %1448 = vmatprep.subr.mxu0 0.0
    %1449 = vmatpush1.msra.mxu0 0.0
    %1450 = vmatprep.subr.mxu0 0.0
    %1451 = vmatpush1.msra.mxu0 0.0
    %1452 = vmatprep.subr.mxu0 0.0
    %1453 = vmatpush1.msra.mxu0 0.0
    %1454 = vmatprep.subr.mxu0 0.0
    %1455 = vmatpush1.msra.mxu0 0.0
    %1456 = vmatprep.subr.mxu0 0.0
    %1457 = vmatpush1.msra.mxu0 0.0
    %1458 = vmatprep.subr.mxu0 0.0
    %1459 = vmatpush1.msra.mxu0 0.0
    %1460 = vmatprep.subr.mxu0 0.0
    %1461 = vmatpush1.msra.mxu0 0.0
    %1462 = vmatprep.subr.mxu0 0.0
    %1463 = vmatpush1.msra.mxu0 0.0
    %1464 = vmatprep.subr.mxu0 0.0
    %1465 = vmatpush1.msra.mxu0 %v1356
    %1466 = vmatprep.subr.mxu0 0.0
    %1467 = vmatpush2.msra.mxu0 0.0
    %1468 = vmatprep.subr.mxu0 0.0
    %1469 = vmatpush2.msra.mxu0 0.0
    %1470 = vmatprep.subr.mxu0 0.0
    %1471 = vmatpush2.msra.mxu0 0.0
    %1472 = vmatprep.subr.mxu0 0.0
    %1473 = vmatpush2.msra.mxu0 0.0
    %1474 = vmatprep.subr.mxu0 0.0
    %1475 = vmatpush2.msra.mxu0 0.0
    %1476 = vmatprep.subr.mxu0 0.0
    %1477 = vmatpush2.msra.mxu0 0.0
    %1478 = vmatprep.subr.mxu0 0.0
    %1479 = vmatpush2.msra.mxu0 0.0
    %1480 = vmatprep.subr.mxu0 0.0
    %1481 = vmatpush2.msra.mxu0 0.0
    %1482 = vmatprep.subr.mxu0 0.0
    %1483 = vmatpush2.msra.mxu0 0.0
    %1484 = vmatprep.subr.mxu0 0.0
    %1485 = vmatpush2.msra.mxu0 0.0
    %1486 = vmatprep.subr.mxu0 0.0
    %1487 = vmatpush2.msra.mxu0 0.0
    %1488 = vmatprep.subr.mxu0 0.0
    %1489 = vmatpush2.msra.mxu0 0.0
    %1490 = vmatprep.subr.mxu0 0.0
    %1491 = vmatpush2.msra.mxu0 0.0
    %1492 = vmatprep.subr.mxu0 0.0
    %1493 = vmatpush2.msra.mxu0 0.0
    %1494 = vmatprep.subr.mxu0 0.0
    %1495 = vmatpush2.msra.mxu0 0.0
    %1496 = vmatprep.subr.mxu0 0.0
    %1497 = vmatpush2.msra.mxu0 0.0
    %1498 = vmatprep.mubr.f32.mxu0 0.0
    %1499 = vmatmul.mubr.f32.gmra.mxu0 %v1432
    %v1500 = vpop.f32.mrf.mxu0
    %v1501 = vadd.f32 %v1428, %v1500
    %v1502 = vpop.f32.mrf.mxu0
    %1503 = vdwg.mxu0
    %v1504 = vadd.f32 %v1501, %v677
    %v1505 = vld [vmem:[#allocation22] sm:$0xff]
    %v1506 = vld [vmem:[#allocation22 + $0x8] sm:$0xff]
    %v1507 = vld [vmem:[#allocation24] sm:$0xff]
    %v1508 = vld [vmem:[#allocation24 + $0x8] sm:$0xff]
    %v1510 = vsel %vm756, %v603, 0
    %1512 = vmatprep.subr.mxu0 0.0
    %1513 = vmatpush1.msra.mxu0 0.0
    %1514 = vmatprep.subr.mxu0 0.0
    %1515 = vmatpush1.msra.mxu0 0.0
    %1516 = vmatprep.subr.mxu0 0.0
    %1517 = vmatpush1.msra.mxu0 0.0
    %1518 = vmatprep.subr.mxu0 0.0
    %1519 = vmatpush1.msra.mxu0 0.0
    %1520 = vmatprep.subr.mxu0 0.0
    %1521 = vmatpush1.msra.mxu0 0.0
    %1522 = vmatprep.subr.mxu0 0.0
    %1523 = vmatpush1.msra.mxu0 0.0
    %1524 = vmatprep.subr.mxu0 0.0
    %1525 = vmatpush1.msra.mxu0 0.0
    %1526 = vmatprep.subr.mxu0 0.0
    %1527 = vmatpush1.msra.mxu0 0.0
    %1528 = vmatprep.subr.mxu0 0.0
    %1529 = vmatpush1.msra.mxu0 0.0
    %1530 = vmatprep.subr.mxu0 0.0
    %1531 = vmatpush1.msra.mxu0 0.0
    %1532 = vmatprep.subr.mxu0 0.0
    %1533 = vmatpush1.msra.mxu0 0.0
    %1534 = vmatprep.subr.mxu0 0.0
    %1535 = vmatpush1.msra.mxu0 0.0
    %1536 = vmatprep.subr.mxu0 0.0
    %1537 = vmatpush1.msra.mxu0 0.0
    %1538 = vmatprep.subr.mxu0 0.0
    %1539 = vmatpush1.msra.mxu0 0.0
    %1540 = vmatprep.subr.mxu0 0.0
    %1541 = vmatpush1.msra.mxu0 %v1508
    %1542 = vmatprep.subr.mxu0 0.0
    %1543 = vmatpush1.msra.mxu0 %v1507
    %1544 = vmatprep.subr.mxu0 0.0
    %1545 = vmatpush2.msra.mxu0 0.0
    %1546 = vmatprep.subr.mxu0 0.0
    %1547 = vmatpush2.msra.mxu0 0.0
    %1548 = vmatprep.subr.mxu0 0.0
    %1549 = vmatpush2.msra.mxu0 0.0
    %1550 = vmatprep.subr.mxu0 0.0
    %1551 = vmatpush2.msra.mxu0 0.0
    %1552 = vmatprep.subr.mxu0 0.0
    %1553 = vmatpush2.msra.mxu0 0.0
    %1554 = vmatprep.subr.mxu0 0.0
    %1555 = vmatpush2.msra.mxu0 0.0
    %1556 = vmatprep.subr.mxu0 0.0
    %1557 = vmatpush2.msra.mxu0 0.0
    %1558 = vmatprep.subr.mxu0 0.0
    %1559 = vmatpush2.msra.mxu0 0.0
    %1560 = vmatprep.subr.mxu0 0.0
    %1561 = vmatpush2.msra.mxu0 0.0
    %1562 = vmatprep.subr.mxu0 0.0
    %1563 = vmatpush2.msra.mxu0 0.0
    %1564 = vmatprep.subr.mxu0 0.0
    %1565 = vmatpush2.msra.mxu0 0.0
    %1566 = vmatprep.subr.mxu0 0.0
    %1567 = vmatpush2.msra.mxu0 0.0
    %1568 = vmatprep.subr.mxu0 0.0
    %1569 = vmatpush2.msra.mxu0 0.0
    %1570 = vmatprep.subr.mxu0 0.0
    %1571 = vmatpush2.msra.mxu0 0.0
    %1572 = vmatprep.subr.mxu0 0.0
    %1573 = vmatpush2.msra.mxu0 0.0
    %1574 = vmatprep.subr.mxu0 0.0
    %1575 = vmatpush2.msra.mxu0 0.0
    %1576 = vmatprep.mubr.f32.mxu0 0.0
    %1577 = vmatmul.mubr.f32.gmra.mxu0 %v1510
    %v1578 = vpop.f32.mrf.mxu0
    %v1579 = vadd.f32 0.0, %v1578
    %v1580 = vpop.f32.mrf.mxu0
    %1581 = vdwg.mxu0
    %v1583 = vsel %vm756, %v1504, 0
    %1585 = vmatprep.subr.mxu0 0.0
    %1586 = vmatpush1.msra.mxu0 0.0
    %1587 = vmatprep.subr.mxu0 0.0
    %1588 = vmatpush1.msra.mxu0 0.0
    %1589 = vmatprep.subr.mxu0 0.0
    %1590 = vmatpush1.msra.mxu0 0.0
    %1591 = vmatprep.subr.mxu0 0.0
    %1592 = vmatpush1.msra.mxu0 0.0
    %1593 = vmatprep.subr.mxu0 0.0
    %1594 = vmatpush1.msra.mxu0 0.0
    %1595 = vmatprep.subr.mxu0 0.0
    %1596 = vmatpush1.msra.mxu0 0.0
    %1597 = vmatprep.subr.mxu0 0.0
    %1598 = vmatpush1.msra.mxu0 0.0
    %1599 = vmatprep.subr.mxu0 0.0
    %1600 = vmatpush1.msra.mxu0 0.0
    %1601 = vmatprep.subr.mxu0 0.0
    %1602 = vmatpush1.msra.mxu0 0.0
    %1603 = vmatprep.subr.mxu0 0.0
    %1604 = vmatpush1.msra.mxu0 0.0
    %1605 = vmatprep.subr.mxu0 0.0
    %1606 = vmatpush1.msra.mxu0 0.0
    %1607 = vmatprep.subr.mxu0 0.0
    %1608 = vmatpush1.msra.mxu0 0.0
    %1609 = vmatprep.subr.mxu0 0.0
    %1610 = vmatpush1.msra.mxu0 0.0
    %1611 = vmatprep.subr.mxu0 0.0
    %1612 = vmatpush1.msra.mxu0 0.0
    %1613 = vmatprep.subr.mxu0 0.0
    %1614 = vmatpush1.msra.mxu0 %v1506
    %1615 = vmatprep.subr.mxu0 0.0
    %1616 = vmatpush1.msra.mxu0 %v1505
    %1617 = vmatprep.subr.mxu0 0.0
    %1618 = vmatpush2.msra.mxu0 0.0
    %1619 = vmatprep.subr.mxu0 0.0
    %1620 = vmatpush2.msra.mxu0 0.0
    %1621 = vmatprep.subr.mxu0 0.0
    %1622 = vmatpush2.msra.mxu0 0.0
    %1623 = vmatprep.subr.mxu0 0.0
    %1624 = vmatpush2.msra.mxu0 0.0
    %1625 = vmatprep.subr.mxu0 0.0
    %1626 = vmatpush2.msra.mxu0 0.0
    %1627 = vmatprep.subr.mxu0 0.0
    %1628 = vmatpush2.msra.mxu0 0.0
    %1629 = vmatprep.subr.mxu0 0.0
    %1630 = vmatpush2.msra.mxu0 0.0
    %1631 = vmatprep.subr.mxu0 0.0
    %1632 = vmatpush2.msra.mxu0 0.0
    %1633 = vmatprep.subr.mxu0 0.0
    %1634 = vmatpush2.msra.mxu0 0.0
    %1635 = vmatprep.subr.mxu0 0.0
    %1636 = vmatpush2.msra.mxu0 0.0
    %1637 = vmatprep.subr.mxu0 0.0
    %1638 = vmatpush2.msra.mxu0 0.0
    %1639 = vmatprep.subr.mxu0 0.0
    %1640 = vmatpush2.msra.mxu0 0.0
    %1641 = vmatprep.subr.mxu0 0.0
    %1642 = vmatpush2.msra.mxu0 0.0
    %1643 = vmatprep.subr.mxu0 0.0
    %1644 = vmatpush2.msra.mxu0 0.0
    %1645 = vmatprep.subr.mxu0 0.0
    %1646 = vmatpush2.msra.mxu0 0.0
    %1647 = vmatprep.subr.mxu0 0.0
    %1648 = vmatpush2.msra.mxu0 0.0
    %1649 = vmatprep.mubr.f32.mxu0 0.0
    %1650 = vmatmul.mubr.f32.gmra.mxu0 %v1583
    %v1651 = vpop.f32.mrf.mxu0
    %v1652 = vadd.f32 %v1579, %v1651
    %v1653 = vpop.f32.mrf.mxu0
    %1654 = vdwg.mxu0
    %v1655 = vadd.f32 %v1652, %v447
    %v1656 = vld [vmem:[#allocation21] sm:$0xff]
    %v1657 = vld [vmem:[#allocation21 + $0x8] sm:$0xff]
    %v1658 = vld [vmem:[#allocation21 + $0x10] sm:$0xff]
    %v1659 = vld [vmem:[#allocation21 + $0x18] sm:$0xff]
    %v1660 = vld [vmem:[%s15] sm:$0xff]
    %v1661 = vld [vmem:[%s15 + $0x8] sm:$0xff]
    %v1662 = vld [vmem:[%s15 + $0x10] sm:$0xff]
    %v1663 = vld [vmem:[%s15 + $0x18] sm:$0xff]
    %v1665 = vsel %vm532, %v369, 0
    %1667 = vmatprep.subr.mxu0 0.0
    %1668 = vmatpush1.msra.mxu0 0.0
    %1669 = vmatprep.subr.mxu0 0.0
    %1670 = vmatpush1.msra.mxu0 0.0
    %1671 = vmatprep.subr.mxu0 0.0
    %1672 = vmatpush1.msra.mxu0 0.0
    %1673 = vmatprep.subr.mxu0 0.0
    %1674 = vmatpush1.msra.mxu0 0.0
    %1675 = vmatprep.subr.mxu0 0.0
    %1676 = vmatpush1.msra.mxu0 0.0
    %1677 = vmatprep.subr.mxu0 0.0
    %1678 = vmatpush1.msra.mxu0 0.0
    %1679 = vmatprep.subr.mxu0 0.0
    %1680 = vmatpush1.msra.mxu0 0.0
    %1681 = vmatprep.subr.mxu0 0.0
    %1682 = vmatpush1.msra.mxu0 0.0
    %1683 = vmatprep.subr.mxu0 0.0
    %1684 = vmatpush1.msra.mxu0 0.0
    %1685 = vmatprep.subr.mxu0 0.0
    %1686 = vmatpush1.msra.mxu0 0.0
    %1687 = vmatprep.subr.mxu0 0.0
    %1688 = vmatpush1.msra.mxu0 0.0
    %1689 = vmatprep.subr.mxu0 0.0
    %1690 = vmatpush1.msra.mxu0 0.0
    %1691 = vmatprep.subr.mxu0 0.0
    %1692 = vmatpush1.msra.mxu0 %v1663
    %1693 = vmatprep.subr.mxu0 0.0
    %1694 = vmatpush1.msra.mxu0 %v1662
    %1695 = vmatprep.subr.mxu0 0.0
    %1696 = vmatpush1.msra.mxu0 %v1661
    %1697 = vmatprep.subr.mxu0 0.0
    %1698 = vmatpush1.msra.mxu0 %v1660
    %1699 = vmatprep.subr.mxu0 0.0
    %1700 = vmatpush2.msra.mxu0 0.0
    %1701 = vmatprep.subr.mxu0 0.0
    %1702 = vmatpush2.msra.mxu0 0.0
    %1703 = vmatprep.subr.mxu0 0.0
    %1704 = vmatpush2.msra.mxu0 0.0
    %1705 = vmatprep.subr.mxu0 0.0
    %1706 = vmatpush2.msra.mxu0 0.0
    %1707 = vmatprep.subr.mxu0 0.0
    %1708 = vmatpush2.msra.mxu0 0.0
    %1709 = vmatprep.subr.mxu0 0.0
    %1710 = vmatpush2.msra.mxu0 0.0
    %1711 = vmatprep.subr.mxu0 0.0
    %1712 = vmatpush2.msra.mxu0 0.0
    %1713 = vmatprep.subr.mxu0 0.0
    %1714 = vmatpush2.msra.mxu0 0.0
    %1715 = vmatprep.subr.mxu0 0.0
    %1716 = vmatpush2.msra.mxu0 0.0
    %1717 = vmatprep.subr.mxu0 0.0
    %1718 = vmatpush2.msra.mxu0 0.0
    %1719 = vmatprep.subr.mxu0 0.0
    %1720 = vmatpush2.msra.mxu0 0.0
    %1721 = vmatprep.subr.mxu0 0.0
    %1722 = vmatpush2.msra.mxu0 0.0
    %1723 = vmatprep.subr.mxu0 0.0
    %1724 = vmatpush2.msra.mxu0 0.0
    %1725 = vmatprep.subr.mxu0 0.0
    %1726 = vmatpush2.msra.mxu0 0.0
    %1727 = vmatprep.subr.mxu0 0.0
    %1728 = vmatpush2.msra.mxu0 0.0
    %1729 = vmatprep.subr.mxu0 0.0
    %1730 = vmatpush2.msra.mxu0 0.0
    %1731 = vmatprep.mubr.f32.mxu0 0.0
    %1732 = vmatmul.mubr.f32.gmra.mxu0 %v1665
    %v1733 = vpop.f32.mrf.mxu0
    %v1734 = vadd.f32 0.0, %v1733
    %v1735 = vpop.f32.mrf.mxu0
    %1736 = vdwg.mxu0
    %v1738 = vsel %vm532, %v1655, 0
    %1740 = vmatprep.subr.mxu0 0.0
    %1741 = vmatpush1.msra.mxu0 0.0
    %1742 = vmatprep.subr.mxu0 0.0
    %1743 = vmatpush1.msra.mxu0 0.0
    %1744 = vmatprep.subr.mxu0 0.0
    %1745 = vmatpush1.msra.mxu0 0.0
    %1746 = vmatprep.subr.mxu0 0.0
    %1747 = vmatpush1.msra.mxu0 0.0
    %1748 = vmatprep.subr.mxu0 0.0
    %1749 = vmatpush1.msra.mxu0 0.0
    %1750 = vmatprep.subr.mxu0 0.0
    %1751 = vmatpush1.msra.mxu0 0.0
    %1752 = vmatprep.subr.mxu0 0.0
    %1753 = vmatpush1.msra.mxu0 0.0
    %1754 = vmatprep.subr.mxu0 0.0
    %1755 = vmatpush1.msra.mxu0 0.0
    %1756 = vmatprep.subr.mxu0 0.0
    %1757 = vmatpush1.msra.mxu0 0.0
    %1758 = vmatprep.subr.mxu0 0.0
    %1759 = vmatpush1.msra.mxu0 0.0
    %1760 = vmatprep.subr.mxu0 0.0
    %1761 = vmatpush1.msra.mxu0 0.0
    %1762 = vmatprep.subr.mxu0 0.0
    %1763 = vmatpush1.msra.mxu0 0.0
    %1764 = vmatprep.subr.mxu0 0.0
    %1765 = vmatpush1.msra.mxu0 %v1659
    %1766 = vmatprep.subr.mxu0 0.0
    %1767 = vmatpush1.msra.mxu0 %v1658
    %1768 = vmatprep.subr.mxu0 0.0
    %1769 = vmatpush1.msra.mxu0 %v1657
    %1770 = vmatprep.subr.mxu0 0.0
    %1771 = vmatpush1.msra.mxu0 %v1656
    %1772 = vmatprep.subr.mxu0 0.0
    %1773 = vmatpush2.msra.mxu0 0.0
    %1774 = vmatprep.subr.mxu0 0.0
    %1775 = vmatpush2.msra.mxu0 0.0
    %1776 = vmatprep.subr.mxu0 0.0
    %1777 = vmatpush2.msra.mxu0 0.0
    %1778 = vmatprep.subr.mxu0 0.0
    %1779 = vmatpush2.msra.mxu0 0.0
    %1780 = vmatprep.subr.mxu0 0.0
    %1781 = vmatpush2.msra.mxu0 0.0
    %1782 = vmatprep.subr.mxu0 0.0
    %1783 = vmatpush2.msra.mxu0 0.0
    %1784 = vmatprep.subr.mxu0 0.0
    %1785 = vmatpush2.msra.mxu0 0.0
    %1786 = vmatprep.subr.mxu0 0.0
    %1787 = vmatpush2.msra.mxu0 0.0
    %1788 = vmatprep.subr.mxu0 0.0
    %1789 = vmatpush2.msra.mxu0 0.0
    %1790 = vmatprep.subr.mxu0 0.0
    %1791 = vmatpush2.msra.mxu0 0.0
    %1792 = vmatprep.subr.mxu0 0.0
    %1793 = vmatpush2.msra.mxu0 0.0
    %1794 = vmatprep.subr.mxu0 0.0
    %1795 = vmatpush2.msra.mxu0 0.0
    %1796 = vmatprep.subr.mxu0 0.0
    %1797 = vmatpush2.msra.mxu0 0.0
    %1798 = vmatprep.subr.mxu0 0.0
    %1799 = vmatpush2.msra.mxu0 0.0
    %1800 = vmatprep.subr.mxu0 0.0
    %1801 = vmatpush2.msra.mxu0 0.0
    %1802 = vmatprep.subr.mxu0 0.0
    %1803 = vmatpush2.msra.mxu0 0.0
    %1804 = vmatprep.mubr.f32.mxu0 0.0
    %1805 = vmatmul.mubr.f32.gmra.mxu0 %v1738
    %v1806 = vpop.f32.mrf.mxu0
    %v1807 = vadd.f32 %v1734, %v1806
    %v1808 = vpop.f32.mrf.mxu0
    %1809 = vdwg.mxu0
    %vm1810 = vcmask 517120
    %1811 = vst.msk [vmem:[%s22] sm:$0x3] %vm1810, %v1807
    // Predicated region
    $region158: #{fwd.1} parent=1 // pred_check
      _
    $region159: #{fwd.1} parent=1 // pred_check_branch
      %1813 = sbr.rel (0) target = $region161
    $region160: #{fwd.1} parent=1 // pred_region
      _
    $region161: #{fwd.1} parent=1 // pred_fallthru
      _
    // Predicated region
    $region162: #{fwd.1} parent=1 // pred_check
      _
    $region163: #{fwd.1} parent=1 // pred_check_branch
      %1815 = sbr.rel (0) target = $region165
    $region164: #{fwd.1} parent=1 // pred_region
      _
    $region165: #{fwd.1} parent=1 // pred_fallthru
      _
    %1816 = vsyncpa [#allocation3], 1
    %1817 = vsyncpa [#allocation5], 1
    %1818 = vsyncpa [#allocation8], 1
    %1819 = vsyncpa [#allocation11], 1
    %1820 = vsyncpa [#allocation14], 1
    %1821 = vsyncpa [#allocation17], 1
    %1822 = vsyncpa [#allocation20], 1
    %1823 = vsyncpa [#allocation23], 1
    %1824 = vsyncpa [#allocation26], 1

</llo_original>
